<compile_context>
chip_gen: v7x
topology: tpu7x:2x2x1
jax: 0.10.0
libtpu: 0.0.40
codegen_flags: <defaults>
</compile_context>

<pallas_src>
import functools
import math

import jax
import jax.numpy as jnp
from jax.experimental import pallas as pl
from jax.experimental.pallas import tpu as pltpu


# ----------------------------------------------------------------------------
# Kernel
# ----------------------------------------------------------------------------
def _attention_kernel(k_ref, q_ref, wk_ref, wq_ref, wp_ref, b_ref, o_ref,
                      *, n_head, batch_tile):
    """One grid step = `batch_tile` batch elements x one q tile (all heads)."""
    f32 = jnp.float32
    wk = wk_ref[...]            # (H, E, hid)   bf16
    wq = wq_ref[...]            # (H, E, hid)   bf16 (pre-scaled by 1/sqrt(hid))
    wp = wp_ref[...]            # (H, hid, O)   bf16
    bias = b_ref[...]           # (1, O)        f32
    cdt = wk.dtype              # compute (MXU operand) dtype, bf16

    for b in range(batch_tile):                       # static, small unroll
        k2 = k_ref[b]                                  # (k_len, E)
        q2 = q_ref[b]                                  # (tq, E)

        # Head-batched projections: broadcast k/q over the head axis (cheap
        # sublane replication), then standard batched MXU matmuls with f32
        # accumulation.  No lane-offset slicing of a fused (len, H*hid) slab.
        kb = jnp.broadcast_to(k2[None], (n_head,) + k2.shape)
        qb = jnp.broadcast_to(q2[None], (n_head,) + q2.shape)
        kx = jnp.einsum('hke,hed->hkd', kb, wk,
                        preferred_element_type=f32)    # (H, k_len, hid) f32
        qx = jnp.einsum('hqe,hed->hqd', qb, wq,
                        preferred_element_type=f32)    # (H, tq,   hid) f32
        kx_c = kx.astype(cdt)
        qx_c = qx.astype(cdt)

        # Scores: contract the last dims directly (no kx transpose).
        s = jnp.einsum('hqd,hkd->hqk', qx_c, kx_c,
                       preferred_element_type=f32)     # (H, tq, k_len) f32

        # Softmax in f32 (exp on EUP, max/sum on XLU, approx recip on EUP).
        s = s - jnp.max(s, axis=-1, keepdims=True)
        p = jnp.exp(s)
        p = p * pl.reciprocal(jnp.sum(p, axis=-1, keepdims=True), approx=True)

        # NOTE: the PyTorch module reuses the *key* projection kx as the value
        # tensor (torch.bmm(score, kx)) — intentional quirk, mirrored here.
        attn = jnp.einsum('hqk,hkd->hqd', p.astype(cdt), kx_c,
                          preferred_element_type=f32)  # (H, tq, hid) f32

        # Output projection: per-head batched matmul + leading-axis sum.
        # (Head-major concat followed by the Linear is exactly
        #  sum_h head_h @ wp[h]; this replaces lane slicing + concatenate.)
        out_h = jnp.einsum('hqd,hdo->hqo', attn.astype(cdt), wp,
                           preferred_element_type=f32)  # (H, tq, O) f32
        out = jnp.sum(out_h, axis=0) + bias             # (tq, O) f32
        o_ref[b] = out.astype(o_ref.dtype)

    # TODO(synk): dropout(p>0) and the 'mlp' / 'bi_linear' score functions are
    # not implemented (dropout=0 is identity, matching the module default).
    # TODO(synk): for long k_len add a k grid axis with flash-style online
    # softmax (running max / denominator in VMEM scratch, pl.when finalize).
    # TODO(synk): out_dim < 128 makes the final store lane-masked (vst.msk);
    # pack q tiles / batch into the lane dim at the wrapper if it stays < 128.


# ----------------------------------------------------------------------------
# Weight preparation (one-time, hoisted off the forward path)
# ----------------------------------------------------------------------------
def prepare_attention_weights(w_kx, w_qx, proj_w, proj_b,
                              *, compute_dtype=jnp.bfloat16):
    """Re-layout + cast the Attention parameters once.

    w_kx / w_qx : (n_head, embed_dim, hidden)  -> bf16, Q pre-scaled by 1/sqrt(hid)
    proj_w      : (out_dim, n_head*hidden)     -> (n_head, hidden, out_dim) bf16
    proj_b      : (out_dim,)                   -> (1, out_dim) f32
    """
    n_head, _, hidden_dim = w_kx.shape
    out_dim = proj_w.shape[0]
    scale = 1.0 / math.sqrt(hidden_dim)
    wk = w_kx.astype(compute_dtype)
    wq = (w_qx.astype(jnp.float32) * scale).astype(compute_dtype)
    # proj(x) with x = concat_h(head_h)  ==  sum_h head_h @ wp[h],
    # where wp[h] = proj_w[:, h*hid:(h+1)*hid].T
    wp = jnp.transpose(proj_w.reshape(out_dim, n_head, hidden_dim),
                       (1, 2, 0)).astype(compute_dtype)
    bias2d = proj_b.reshape(1, out_dim).astype(jnp.float32)
    return wk, wq, wp, bias2d


# ----------------------------------------------------------------------------
# Tiling helpers
# ----------------------------------------------------------------------------
def _pick_q_tile(q_len):
    if q_len <= 512:
        return q_len                       # full axis (block dim == array dim)
    for t in range(512, 7, -8):            # multiple-of-8 divisor, <= 512
        if q_len % t == 0:
            return t
    return q_len                           # fall back to the untiled axis


def _pick_batch_tile(mb, k_len, q_tile, embed_dim, itemsize):
    # Grow the per-step batch block toward ~512 KiB of streamed k+q data so
    # tiny per-example blocks do not leave the kernel per-step-overhead bound,
    # but keep >=2 grid steps on the batch axis when possible (v7x megacore).
    per_example = (k_len + q_tile) * embed_dim * itemsize
    want = max(1, (512 * 1024) // max(per_example, 1))
    bt = 1
    for d in range(1, mb + 1):
        if mb % d == 0 and d <= want:
            bt = d
    if mb // bt < 2:
        for d in range(bt, 0, -1):
            if mb % d == 0 and mb // d >= 2:
                bt = d
                break
    return bt


# ----------------------------------------------------------------------------
# pallas_call builder + forward wrapper
# ----------------------------------------------------------------------------
def _build_attention_call(*, mb, k_len, q_len, embed_dim, n_head, hidden_dim,
                          out_dim, out_dtype, compute_dtype, batch_tile,
                          q_tile, single_buffer_weights):
    def const_spec(shape):
        # Constant operands (index_map always zeros): single-buffering halves
        # their VMEM footprint; they are never re-fetched across the grid.
        kwargs = {}
        if single_buffer_weights:
            kwargs['pipeline_mode'] = pl.Buffered(1)
        zeros = (0,) * len(shape)
        return pl.BlockSpec(shape, lambda bi, qi: zeros, **kwargs)

    kernel = functools.partial(_attention_kernel,
                               n_head=n_head, batch_tile=batch_tile)
    grid = (mb // batch_tile, q_len // q_tile)

    # Explicit scoped-VMEM budget: ~2x the streamed (double-buffered) blocks
    # plus the resident weights plus headroom, never above v7x's 64 MiB.
    csize = jnp.dtype(compute_dtype).itemsize
    osize = jnp.dtype(out_dtype).itemsize
    streamed = (batch_tile * (k_len + q_tile) * embed_dim * csize
                + batch_tile * q_tile * out_dim * osize)
    resident = ((2 * n_head * embed_dim * hidden_dim
                 + n_head * hidden_dim * out_dim) * csize + out_dim * 4)
    weight_bufs = 1 if single_buffer_weights else 2
    want = 2 * streamed + weight_bufs * resident + (16 << 20)
    vmem_limit = int(min(64 << 20, max(32 << 20, want)))

    return pl.pallas_call(
        kernel,
        out_shape=jax.ShapeDtypeStruct((mb, q_len, out_dim), out_dtype),
        grid_spec=pltpu.PrefetchScalarGridSpec(
            num_scalar_prefetch=0,
            grid=grid,
            in_specs=[
                pl.BlockSpec((batch_tile, k_len, embed_dim),
                             lambda bi, qi: (bi, 0, 0)),
                pl.BlockSpec((batch_tile, q_tile, embed_dim),
                             lambda bi, qi: (bi, qi, 0)),
                const_spec((n_head, embed_dim, hidden_dim)),
                const_spec((n_head, embed_dim, hidden_dim)),
                const_spec((n_head, hidden_dim, out_dim)),
                const_spec((1, out_dim)),
            ],
            out_specs=pl.BlockSpec((batch_tile, q_tile, out_dim),
                                   lambda bi, qi: (bi, qi, 0)),
        ),
        compiler_params=pltpu.CompilerParams(
            dimension_semantics=("parallel", "parallel"),
            vmem_limit_bytes=vmem_limit),
    )


def attention_forward(k, q, wk, wq, wp, bias2d, *, n_head,
                      batch_tile=None, q_tile=None):
    """Pallas equivalent of Attention.forward (score_function='scaled_dot_product')."""
    if k.ndim == 2:
        k = k[None]
    if q.ndim == 2:
        q = q[None]
    out_dtype = k.dtype
    compute_dtype = wk.dtype

    n_head_w, embed_dim, hidden_dim = wk.shape
    assert n_head_w == n_head, (n_head_w, n_head)
    out_dim = wp.shape[-1]
    mb, k_len, _ = k.shape
    q_len = q.shape[1]

    if q_tile is None:
        q_tile = _pick_q_tile(q_len)
    if batch_tile is None:
        batch_tile = _pick_batch_tile(mb, k_len, q_tile, embed_dim,
                                      jnp.dtype(compute_dtype).itemsize)

    # bf16 operands for every MXU matmul (f32 accumulation in-kernel);
    # also halves the k/q HBM traffic.
    k_c = k.astype(compute_dtype)
    q_c = q.astype(compute_dtype)

    def run(single_buffer_weights):
        call = _build_attention_call(
            mb=mb, k_len=k_len, q_len=q_len, embed_dim=embed_dim,
            n_head=n_head, hidden_dim=hidden_dim, out_dim=out_dim,
            out_dtype=out_dtype, compute_dtype=compute_dtype,
            batch_tile=batch_tile, q_tile=q_tile,
            single_buffer_weights=single_buffer_weights)
        return call(k_c, q_c, wk, wq, wp, bias2d)

    try:
        out = run(True)
    except Exception:
        # pl.Buffered(1) / BlockSpec.pipeline_mode unsupported on this jax:
        # fall back to default double-buffered weights (identical results).
        out = run(False)

    # Mirror torch.squeeze(output, dim=0): only squeezes when mb == 1.
    if out.shape[0] == 1:
        out = out[0]
    return out


# ----------------------------------------------------------------------------
# Pure-JAX reference (mirrors the PyTorch forward exactly, in f32)
# ----------------------------------------------------------------------------
def _reference(k, q, w_kx, w_qx, proj_w, proj_b):
    n_head, _, hidden_dim = w_kx.shape
    mb = k.shape[0]
    q_len = q.shape[1]
    kx = jnp.einsum('bke,hed->hbkd', k, w_kx)          # (H, mb, k_len, hid)
    qx = jnp.einsum('bqe,hed->hbqd', q, w_qx)          # (H, mb, q_len, hid)
    score = jnp.einsum('hbqd,hbkd->hbqk', qx, kx) / math.sqrt(hidden_dim)
    p = jax.nn.softmax(score, axis=-1)
    out_h = jnp.einsum('hbqk,hbkd->hbqd', p, kx)       # (H, mb, q_len, hid)
    out = jnp.transpose(out_h, (1, 2, 0, 3)).reshape(mb, q_len,
                                                     n_head * hidden_dim)
    y = out @ proj_w.T + proj_b
    if y.shape[0] == 1:
        y = y[0]
    return y


if __name__ == "__main__":
    # Small deterministic configuration (module defaults: hidden = embed//n_head,
    # out_dim = embed).
    embed_dim, n_head = 32, 2
    hidden_dim = embed_dim // n_head          # 16
    out_dim = embed_dim                       # 32
    mb, k_len, q_len = 2, 8, 8

    key = jax.random.PRNGKey(0)
    k_k, k_q, k_wk, k_wq, k_pw, k_pb = jax.random.split(key, 6)

    stdv = 1.0 / math.sqrt(hidden_dim)
    w_kx = jax.random.uniform(k_wk, (n_head, embed_dim, hidden_dim),
                              jnp.float32, -stdv, stdv)
    w_qx = jax.random.uniform(k_wq, (n_head, embed_dim, hidden_dim),
                              jnp.float32, -stdv, stdv)
    lin_bound = 1.0 / math.sqrt(n_head * hidden_dim)
    proj_w = jax.random.uniform(k_pw, (out_dim, n_head * hidden_dim),
                                jnp.float32, -lin_bound, lin_bound)
    proj_b = jax.random.uniform(k_pb, (out_dim,),
                                jnp.float32, -lin_bound, lin_bound)

    k_in = jax.random.normal(k_k, (mb, k_len, embed_dim), jnp.float32)
    q_in = jax.random.normal(k_q, (mb, q_len, embed_dim), jnp.float32)

    # One-time weight re-layout / scale-fold / bf16 cast.
    wk, wq, wp, bias2d = prepare_attention_weights(w_kx, w_qx, proj_w, proj_b)

    out = attention_forward(k_in, q_in, wk, wq, wp, bias2d, n_head=n_head)
    out = jax.block_until_ready(out)

    ref = _reference(k_in, q_in, w_kx, w_qx, proj_w, proj_b)
    assert out.shape == ref.shape, (out.shape, ref.shape)
    # bf16 MXU operands (f32 accumulation) vs. a pure-f32 reference ->
    # tolerance loosened accordingly.
    out_f32 = out.astype(jnp.float32)
    max_err = float(jnp.max(jnp.abs(out_f32 - ref)))
    assert jnp.allclose(out_f32, ref, rtol=3e-2, atol=3e-2), max_err

    print("KERNEL_OK")
</pallas_src>

<mosaic_0001>
module attributes {stable_mosaic.version = 11 : i64} {
  func.func @_attention_kernel(%arg0: i32, %arg1: i32, %arg2: memref<1x8x32xbf16, #tpu.memory_space<vmem>>, %arg3: memref<1x8x32xbf16, #tpu.memory_space<vmem>>, %arg4: memref<2x32x16xbf16, #tpu.memory_space<vmem>>, %arg5: memref<2x32x16xbf16, #tpu.memory_space<vmem>>, %arg6: memref<2x16x32xbf16, #tpu.memory_space<vmem>>, %arg7: memref<1x32xf32, #tpu.memory_space<vmem>>, %arg8: memref<1x8x32xf32, #tpu.memory_space<vmem>>) attributes {dimension_semantics = [#tpu.dimension_semantics<parallel>, #tpu.dimension_semantics<parallel>], iteration_bounds = array<i64: 2, 1>, scalar_prefetch = 0 : i64, scratch_operands = 0 : i64, tpu.core_type = #tpu.core_type<tc>, window_params = [{transform_indices = @transform_0, window_bounds = array<i64: 1, 8, 32>}, {transform_indices = @transform_1, window_bounds = array<i64: 1, 8, 32>}, {pipeline_mode = #tpu.pipeline_mode<synchronous>, transform_indices = @transform_2, window_bounds = array<i64: 2, 32, 16>}, {pipeline_mode = #tpu.pipeline_mode<synchronous>, transform_indices = @transform_3, window_bounds = array<i64: 2, 32, 16>}, {pipeline_mode = #tpu.pipeline_mode<synchronous>, transform_indices = @transform_4, window_bounds = array<i64: 2, 16, 32>}, {pipeline_mode = #tpu.pipeline_mode<synchronous>, transform_indices = @transform_5, window_bounds = array<i64: 1, 32>}, {transform_indices = @transform_6, window_bounds = array<i64: 1, 8, 32>}]} {
    %c0 = arith.constant 0 : index
    %c0_0 = arith.constant 0 : index
    %c0_1 = arith.constant 0 : index
    %0 = vector.load %arg4[%c0, %c0_0, %c0_1] : memref<2x32x16xbf16, #tpu.memory_space<vmem>>, vector<2x32x16xbf16>
    %c0_2 = arith.constant 0 : index
    %c0_3 = arith.constant 0 : index
    %c0_4 = arith.constant 0 : index
    %1 = vector.load %arg5[%c0_2, %c0_3, %c0_4] : memref<2x32x16xbf16, #tpu.memory_space<vmem>>, vector<2x32x16xbf16>
    %c0_5 = arith.constant 0 : index
    %c0_6 = arith.constant 0 : index
    %c0_7 = arith.constant 0 : index
    %2 = vector.load %arg6[%c0_5, %c0_6, %c0_7] : memref<2x16x32xbf16, #tpu.memory_space<vmem>>, vector<2x16x32xbf16>
    %c0_8 = arith.constant 0 : index
    %c0_9 = arith.constant 0 : index
    %3 = vector.load %arg7[%c0_8, %c0_9] : memref<1x32xf32, #tpu.memory_space<vmem>>, vector<1x32xf32>
    %c0_10 = arith.constant 0 : index
    %c0_11 = arith.constant 0 : index
    %c0_12 = arith.constant 0 : index
    %4 = vector.load %arg2[%c0_10, %c0_11, %c0_12] : memref<1x8x32xbf16, #tpu.memory_space<vmem>>, vector<1x8x32xbf16>
    %5 = vector.shape_cast %4 : vector<1x8x32xbf16> to vector<8x32xbf16>
    %c0_13 = arith.constant 0 : index
    %c0_14 = arith.constant 0 : index
    %c0_15 = arith.constant 0 : index
    %6 = vector.load %arg3[%c0_13, %c0_14, %c0_15] : memref<1x8x32xbf16, #tpu.memory_space<vmem>>, vector<1x8x32xbf16>
    %7 = vector.shape_cast %6 : vector<1x8x32xbf16> to vector<8x32xbf16>
    %8 = vector.shape_cast %5 : vector<8x32xbf16> to vector<1x8x32xbf16>
    %9 = vector.shape_cast %8 : vector<1x8x32xbf16> to vector<1x8x32xbf16>
    %10 = vector.broadcast %9 : vector<1x8x32xbf16> to vector<2x8x32xbf16>
    %11 = vector.shape_cast %7 : vector<8x32xbf16> to vector<1x8x32xbf16>
    %12 = vector.shape_cast %11 : vector<1x8x32xbf16> to vector<1x8x32xbf16>
    %13 = vector.broadcast %12 : vector<1x8x32xbf16> to vector<2x8x32xbf16>
    "tpu.trace_start"() <{level = 10 : i32, message = "hke,hed->hkd"}> : () -> ()
    %cst = arith.constant dense<0.000000e+00> : vector<2x8x16xf32>
    %14 = tpu.matmul %10, %0, %cst {dimension_numbers = #tpu.dot_dimension_numbers<[2], [1], [1], [2], [0, 0, 0, 1, 1, 2], [0], [0]>} : vector<2x8x32xbf16>, vector<2x32x16xbf16>, vector<2x8x16xf32> -> vector<2x8x16xf32>
    "tpu.trace_stop"() : () -> ()
    "tpu.trace_start"() <{level = 10 : i32, message = "hqe,hed->hqd"}> : () -> ()
    %cst_16 = arith.constant dense<0.000000e+00> : vector<2x8x16xf32>
    %15 = tpu.matmul %13, %1, %cst_16 {dimension_numbers = #tpu.dot_dimension_numbers<[2], [1], [1], [2], [0, 0, 0, 1, 1, 2], [0], [0]>} : vector<2x8x32xbf16>, vector<2x32x16xbf16>, vector<2x8x16xf32> -> vector<2x8x16xf32>
    "tpu.trace_stop"() : () -> ()
    %16 = arith.truncf %14 : vector<2x8x16xf32> to vector<2x8x16xbf16>
    %17 = arith.truncf %15 : vector<2x8x16xf32> to vector<2x8x16xbf16>
    "tpu.trace_start"() <{level = 10 : i32, message = "hqd,hkd->hqk"}> : () -> ()
    %cst_17 = arith.constant dense<0.000000e+00> : vector<2x8x8xf32>
    %18 = tpu.matmul %17, %16, %cst_17 {dimension_numbers = #tpu.dot_dimension_numbers<[2], [2], [1], [1], [0, 0, 0, 1, 1, 1], [0], [0]>} : vector<2x8x16xbf16>, vector<2x8x16xbf16>, vector<2x8x8xf32> -> vector<2x8x8xf32>
    "tpu.trace_stop"() : () -> ()
    %cst_18 = arith.constant dense<0xFF800000> : vector<2x8xf32>
    %19 = vector.multi_reduction <maximumf>, %18, %cst_18 [2] : vector<2x8x8xf32> to vector<2x8xf32>
    %20 = vector.shape_cast %19 : vector<2x8xf32> to vector<2x8x1xf32>
    %21 = vector.broadcast %20 : vector<2x8x1xf32> to vector<2x8x8xf32>
    %22 = arith.subf %18, %21 : vector<2x8x8xf32>
    %23 = math.exp %22 : vector<2x8x8xf32>
    %cst_19 = arith.constant dense<0.000000e+00> : vector<2x8xf32>
    %24 = vector.multi_reduction <add>, %23, %cst_19 [2] : vector<2x8x8xf32> to vector<2x8xf32>
    %25 = vector.shape_cast %24 : vector<2x8xf32> to vector<2x8x1xf32>
    %26 = tpu.reciprocal %25 {approx = true} : vector<2x8x1xf32> -> vector<2x8x1xf32>
    %27 = vector.broadcast %26 : vector<2x8x1xf32> to vector<2x8x8xf32>
    %28 = arith.mulf %23, %27 : vector<2x8x8xf32>
    %29 = arith.truncf %28 : vector<2x8x8xf32> to vector<2x8x8xbf16>
    "tpu.trace_start"() <{level = 10 : i32, message = "hqk,hkd->hqd"}> : () -> ()
    %cst_20 = arith.constant dense<0.000000e+00> : vector<2x8x16xf32>
    %30 = tpu.matmul %29, %16, %cst_20 {dimension_numbers = #tpu.dot_dimension_numbers<[2], [1], [1], [2], [0, 0, 0, 1, 1, 2], [0], [0]>} : vector<2x8x8xbf16>, vector<2x8x16xbf16>, vector<2x8x16xf32> -> vector<2x8x16xf32>
    "tpu.trace_stop"() : () -> ()
    %31 = arith.truncf %30 : vector<2x8x16xf32> to vector<2x8x16xbf16>
    "tpu.trace_start"() <{level = 10 : i32, message = "hqd,hdo->hqo"}> : () -> ()
    %cst_21 = arith.constant dense<0.000000e+00> : vector<2x8x32xf32>
    %32 = tpu.matmul %31, %2, %cst_21 {dimension_numbers = #tpu.dot_dimension_numbers<[2], [1], [1], [2], [0, 0, 0, 1, 1, 2], [0], [0]>} : vector<2x8x16xbf16>, vector<2x16x32xbf16>, vector<2x8x32xf32> -> vector<2x8x32xf32>
    "tpu.trace_stop"() : () -> ()
    %cst_22 = arith.constant dense<0.000000e+00> : vector<8x32xf32>
    %33 = vector.multi_reduction <add>, %32, %cst_22 [0] : vector<2x8x32xf32> to vector<8x32xf32>
    %34 = vector.broadcast %3 : vector<1x32xf32> to vector<8x32xf32>
    %35 = arith.addf %33, %34 : vector<8x32xf32>
    %c0_23 = arith.constant 0 : index
    %c0_24 = arith.constant 0 : index
    %c0_25 = arith.constant 0 : index
    %36 = vector.load %arg8[%c0_23, %c0_24, %c0_25] : memref<1x8x32xf32, #tpu.memory_space<vmem>>, vector<1x8x32xf32>
    %37 = vector.shape_cast %36 : vector<1x8x32xf32> to vector<8x32xf32>
    %38 = vector.shape_cast %35 : vector<8x32xf32> to vector<1x8x32xf32>
    tpu.vector_store %arg8[%c0_23, %c0_24, %c0_25], %38 {strides = array<i32>} : memref<1x8x32xf32, #tpu.memory_space<vmem>>, vector<1x8x32xf32>,
    return
  }
  func.func @transform_0(%arg0: i32, %arg1: i32) -> (i32, i32, i32) {
    %c0_i32 = arith.constant 0 : i32
    %c0_i32_0 = arith.constant 0 : i32
    %c0_i32_1 = arith.constant 0 : i32
    return %arg0, %c0_i32, %c0_i32_0 : i32, i32, i32
  }
  func.func @transform_1(%arg0: i32, %arg1: i32) -> (i32, i32, i32) {
    %c0_i32 = arith.constant 0 : i32
    %c0_i32_0 = arith.constant 0 : i32
    return %arg0, %arg1, %c0_i32 : i32, i32, i32
  }
  func.func @transform_2(%arg0: i32, %arg1: i32) -> (i32, i32, i32) {
    %c0_i32 = arith.constant 0 : i32
    %c0_i32_0 = arith.constant 0 : i32
    %c0_i32_1 = arith.constant 0 : i32
    %c0_i32_2 = arith.constant 0 : i32
    return %c0_i32, %c0_i32_0, %c0_i32_1 : i32, i32, i32
  }
  func.func @transform_3(%arg0: i32, %arg1: i32) -> (i32, i32, i32) {
    %c0_i32 = arith.constant 0 : i32
    %c0_i32_0 = arith.constant 0 : i32
    %c0_i32_1 = arith.constant 0 : i32
    %c0_i32_2 = arith.constant 0 : i32
    return %c0_i32, %c0_i32_0, %c0_i32_1 : i32, i32, i32
  }
  func.func @transform_4(%arg0: i32, %arg1: i32) -> (i32, i32, i32) {
    %c0_i32 = arith.constant 0 : i32
    %c0_i32_0 = arith.constant 0 : i32
    %c0_i32_1 = arith.constant 0 : i32
    %c0_i32_2 = arith.constant 0 : i32
    return %c0_i32, %c0_i32_0, %c0_i32_1 : i32, i32, i32
  }
  func.func @transform_5(%arg0: i32, %arg1: i32) -> (i32, i32) {
    %c0_i32 = arith.constant 0 : i32
    %c0_i32_0 = arith.constant 0 : i32
    %c0_i32_1 = arith.constant 0 : i32
    return %c0_i32, %c0_i32_0 : i32, i32
  }
  func.func @transform_6(%arg0: i32, %arg1: i32) -> (i32, i32, i32) {
    %c0_i32 = arith.constant 0 : i32
    %c0_i32_0 = arith.constant 0 : i32
    return %arg0, %arg1, %c0_i32 : i32, i32, i32
  }
}

module attributes {stable_mosaic.version = 11 : i64} {
  func.func @_attention_kernel(%arg0: i32, %arg1: i32, %arg2: memref<1x8x32xbf16, #tpu.memory_space<vmem>>, %arg3: memref<1x8x32xbf16, #tpu.memory_space<vmem>>, %arg4: memref<2x32x16xbf16, #tpu.memory_space<vmem>>, %arg5: memref<2x32x16xbf16, #tpu.memory_space<vmem>>, %arg6: memref<2x16x32xbf16, #tpu.memory_space<vmem>>, %arg7: memref<1x32xf32, #tpu.memory_space<vmem>>, %arg8: memref<1x8x32xf32, #tpu.memory_space<vmem>>) attributes {dimension_semantics = [#tpu.dimension_semantics<parallel>, #tpu.dimension_semantics<parallel>], iteration_bounds = array<i64: 2, 1>, scalar_prefetch = 0 : i64, scratch_operands = 0 : i64, tpu.core_type = #tpu.core_type<tc>, window_params = [{transform_indices = @transform_0, window_bounds = array<i64: 1, 8, 32>}, {transform_indices = @transform_1, window_bounds = array<i64: 1, 8, 32>}, {pipeline_mode = #tpu.pipeline_mode<synchronous>, transform_indices = @transform_2, window_bounds = array<i64: 2, 32, 16>}, {pipeline_mode = #tpu.pipeline_mode<synchronous>, transform_indices = @transform_3, window_bounds = array<i64: 2, 32, 16>}, {pipeline_mode = #tpu.pipeline_mode<synchronous>, transform_indices = @transform_4, window_bounds = array<i64: 2, 16, 32>}, {pipeline_mode = #tpu.pipeline_mode<synchronous>, transform_indices = @transform_5, window_bounds = array<i64: 1, 32>}, {transform_indices = @transform_6, window_bounds = array<i64: 1, 8, 32>}]} {
    %c0 = arith.constant 0 : index
    %c0_0 = arith.constant 0 : index
    %c0_1 = arith.constant 0 : index
    %0 = vector.load %arg4[%c0, %c0_0, %c0_1] : memref<2x32x16xbf16, #tpu.memory_space<vmem>>, vector<2x32x16xbf16>
    %c0_2 = arith.constant 0 : index
    %c0_3 = arith.constant 0 : index
    %c0_4 = arith.constant 0 : index
    %1 = vector.load %arg5[%c0_2, %c0_3, %c0_4] : memref<2x32x16xbf16, #tpu.memory_space<vmem>>, vector<2x32x16xbf16>
    %c0_5 = arith.constant 0 : index
    %c0_6 = arith.constant 0 : index
    %c0_7 = arith.constant 0 : index
    %2 = vector.load %arg6[%c0_5, %c0_6, %c0_7] : memref<2x16x32xbf16, #tpu.memory_space<vmem>>, vector<2x16x32xbf16>
    %c0_8 = arith.constant 0 : index
    %c0_9 = arith.constant 0 : index
    %3 = vector.load %arg7[%c0_8, %c0_9] : memref<1x32xf32, #tpu.memory_space<vmem>>, vector<1x32xf32>
    %c0_10 = arith.constant 0 : index
    %c0_11 = arith.constant 0 : index
    %c0_12 = arith.constant 0 : index
    %4 = vector.load %arg2[%c0_10, %c0_11, %c0_12] : memref<1x8x32xbf16, #tpu.memory_space<vmem>>, vector<1x8x32xbf16>
    %5 = vector.shape_cast %4 : vector<1x8x32xbf16> to vector<8x32xbf16>
    %c0_13 = arith.constant 0 : index
    %c0_14 = arith.constant 0 : index
    %c0_15 = arith.constant 0 : index
    %6 = vector.load %arg3[%c0_13, %c0_14, %c0_15] : memref<1x8x32xbf16, #tpu.memory_space<vmem>>, vector<1x8x32xbf16>
    %7 = vector.shape_cast %6 : vector<1x8x32xbf16> to vector<8x32xbf16>
    %8 = vector.shape_cast %5 : vector<8x32xbf16> to vector<1x8x32xbf16>
    %9 = vector.shape_cast %8 : vector<1x8x32xbf16> to vector<1x8x32xbf16>
    %10 = vector.broadcast %9 : vector<1x8x32xbf16> to vector<2x8x32xbf16>
    %11 = vector.shape_cast %7 : vector<8x32xbf16> to vector<1x8x32xbf16>
    %12 = vector.shape_cast %11 : vector<1x8x32xbf16> to vector<1x8x32xbf16>
    %13 = vector.broadcast %12 : vector<1x8x32xbf16> to vector<2x8x32xbf16>
    "tpu.trace_start"() <{level = 10 : i32, message = "hke,hed->hkd"}> : () -> ()
    %cst = arith.constant dense<0.000000e+00> : vector<2x8x16xf32>
    %14 = tpu.matmul %10, %0, %cst {dimension_numbers = #tpu.dot_dimension_numbers<[2], [1], [1], [2], [0, 0, 0, 1, 1, 2], [0], [0]>} : vector<2x8x32xbf16>, vector<2x32x16xbf16>, vector<2x8x16xf32> -> vector<2x8x16xf32>
    "tpu.trace_stop"() : () -> ()
    "tpu.trace_start"() <{level = 10 : i32, message = "hqe,hed->hqd"}> : () -> ()
    %cst_16 = arith.constant dense<0.000000e+00> : vector<2x8x16xf32>
    %15 = tpu.matmul %13, %1, %cst_16 {dimension_numbers = #tpu.dot_dimension_numbers<[2], [1], [1], [2], [0, 0, 0, 1, 1, 2], [0], [0]>} : vector<2x8x32xbf16>, vector<2x32x16xbf16>, vector<2x8x16xf32> -> vector<2x8x16xf32>
    "tpu.trace_stop"() : () -> ()
    %16 = arith.truncf %14 : vector<2x8x16xf32> to vector<2x8x16xbf16>
    %17 = arith.truncf %15 : vector<2x8x16xf32> to vector<2x8x16xbf16>
    "tpu.trace_start"() <{level = 10 : i32, message = "hqd,hkd->hqk"}> : () -> ()
    %cst_17 = arith.constant dense<0.000000e+00> : vector<2x8x8xf32>
    %18 = tpu.matmul %17, %16, %cst_17 {dimension_numbers = #tpu.dot_dimension_numbers<[2], [2], [1], [1], [0, 0, 0, 1, 1, 1], [0], [0]>} : vector<2x8x16xbf16>, vector<2x8x16xbf16>, vector<2x8x8xf32> -> vector<2x8x8xf32>
    "tpu.trace_stop"() : () -> ()
    %cst_18 = arith.constant dense<0xFF800000> : vector<2x8xf32>
    %19 = vector.multi_reduction <maximumf>, %18, %cst_18 [2] : vector<2x8x8xf32> to vector<2x8xf32>
    %20 = vector.shape_cast %19 : vector<2x8xf32> to vector<2x8x1xf32>
    %21 = vector.broadcast %20 : vector<2x8x1xf32> to vector<2x8x8xf32>
    %22 = arith.subf %18, %21 : vector<2x8x8xf32>
    %23 = math.exp %22 : vector<2x8x8xf32>
    %cst_19 = arith.constant dense<0.000000e+00> : vector<2x8xf32>
    %24 = vector.multi_reduction <add>, %23, %cst_19 [2] : vector<2x8x8xf32> to vector<2x8xf32>
    %25 = vector.shape_cast %24 : vector<2x8xf32> to vector<2x8x1xf32>
    %26 = tpu.reciprocal %25 {approx = true} : vector<2x8x1xf32> -> vector<2x8x1xf32>
    %27 = vector.broadcast %26 : vector<2x8x1xf32> to vector<2x8x8xf32>
    %28 = arith.mulf %23, %27 : vector<2x8x8xf32>
    %29 = arith.truncf %28 : vector<2x8x8xf32> to vector<2x8x8xbf16>
    "tpu.trace_start"() <{level = 10 : i32, message = "hqk,hkd->hqd"}> : () -> ()
    %cst_20 = arith.constant dense<0.000000e+00> : vector<2x8x16xf32>
    %30 = tpu.matmul %29, %16, %cst_20 {dimension_numbers = #tpu.dot_dimension_numbers<[2], [1], [1], [2], [0, 0, 0, 1, 1, 2], [0], [0]>} : vector<2x8x8xbf16>, vector<2x8x16xbf16>, vector<2x8x16xf32> -> vector<2x8x16xf32>
    "tpu.trace_stop"() : () -> ()
    %31 = arith.truncf %30 : vector<2x8x16xf32> to vector<2x8x16xbf16>
    "tpu.trace_start"() <{level = 10 : i32, message = "hqd,hdo->hqo"}> : () -> ()
    %cst_21 = arith.constant dense<0.000000e+00> : vector<2x8x32xf32>
    %32 = tpu.matmul %31, %2, %cst_21 {dimension_numbers = #tpu.dot_dimension_numbers<[2], [1], [1], [2], [0, 0, 0, 1, 1, 2], [0], [0]>} : vector<2x8x16xbf16>, vector<2x16x32xbf16>, vector<2x8x32xf32> -> vector<2x8x32xf32>
    "tpu.trace_stop"() : () -> ()
    %cst_22 = arith.constant dense<0.000000e+00> : vector<8x32xf32>
    %33 = vector.multi_reduction <add>, %32, %cst_22 [0] : vector<2x8x32xf32> to vector<8x32xf32>
    %34 = vector.broadcast %3 : vector<1x32xf32> to vector<8x32xf32>
    %35 = arith.addf %33, %34 : vector<8x32xf32>
    %c0_23 = arith.constant 0 : index
    %c0_24 = arith.constant 0 : index
    %c0_25 = arith.constant 0 : index
    %36 = vector.load %arg8[%c0_23, %c0_24, %c0_25] : memref<1x8x32xf32, #tpu.memory_space<vmem>>, vector<1x8x32xf32>
    %37 = vector.shape_cast %36 : vector<1x8x32xf32> to vector<8x32xf32>
    %38 = vector.shape_cast %35 : vector<8x32xf32> to vector<1x8x32xf32>
    tpu.vector_store %arg8[%c0_23, %c0_24, %c0_25], %38 {strides = array<i32>} : memref<1x8x32xf32, #tpu.memory_space<vmem>>, vector<1x8x32xf32>,
    return
  }
  func.func @transform_0(%arg0: i32, %arg1: i32) -> (i32, i32, i32) {
    %c0_i32 = arith.constant 0 : i32
    %c0_i32_0 = arith.constant 0 : i32
    %c0_i32_1 = arith.constant 0 : i32
    return %arg0, %c0_i32, %c0_i32_0 : i32, i32, i32
  }
  func.func @transform_1(%arg0: i32, %arg1: i32) -> (i32, i32, i32) {
    %c0_i32 = arith.constant 0 : i32
    %c0_i32_0 = arith.constant 0 : i32
    return %arg0, %arg1, %c0_i32 : i32, i32, i32
  }
  func.func @transform_2(%arg0: i32, %arg1: i32) -> (i32, i32, i32) {
    %c0_i32 = arith.constant 0 : i32
    %c0_i32_0 = arith.constant 0 : i32
    %c0_i32_1 = arith.constant 0 : i32
    %c0_i32_2 = arith.constant 0 : i32
    return %c0_i32, %c0_i32_0, %c0_i32_1 : i32, i32, i32
  }
  func.func @transform_3(%arg0: i32, %arg1: i32) -> (i32, i32, i32) {
    %c0_i32 = arith.constant 0 : i32
    %c0_i32_0 = arith.constant 0 : i32
    %c0_i32_1 = arith.constant 0 : i32
    %c0_i32_2 = arith.constant 0 : i32
    return %c0_i32, %c0_i32_0, %c0_i32_1 : i32, i32, i32
  }
  func.func @transform_4(%arg0: i32, %arg1: i32) -> (i32, i32, i32) {
    %c0_i32 = arith.constant 0 : i32
    %c0_i32_0 = arith.constant 0 : i32
    %c0_i32_1 = arith.constant 0 : i32
    %c0_i32_2 = arith.constant 0 : i32
    return %c0_i32, %c0_i32_0, %c0_i32_1 : i32, i32, i32
  }
  func.func @transform_5(%arg0: i32, %arg1: i32) -> (i32, i32) {
    %c0_i32 = arith.constant 0 : i32
    %c0_i32_0 = arith.constant 0 : i32
    %c0_i32_1 = arith.constant 0 : i32
    return %c0_i32, %c0_i32_0 : i32, i32
  }
  func.func @transform_6(%arg0: i32, %arg1: i32) -> (i32, i32, i32) {
    %c0_i32 = arith.constant 0 : i32
    %c0_i32_0 = arith.constant 0 : i32
    return %arg0, %arg1, %c0_i32 : i32, i32, i32
  }
}

</mosaic_0001>

<llo_original>
// kernel: tpu_custom_call.1
$region0: #{tpu_custom_call.1}
  #allocation0 [shape = 'u32[]', space=smem, size = 0x4, offset = 0x4, fixed_abs, tag = 'smem constant byte address 0x4 - core index']
  #allocation1 [shape = 'u32[144,128]{1,0:T(1,128)}', space=vmem, size = 0x12000, scoped, tag = 'internal scratch']
  %s0 = inlined_call_operand.vmem [shape: bf16[2,8,32], index: 0, kind: input, shape index: {}]
  %s1 = inlined_call_operand.vmem [shape: bf16[2,8,32], index: 1, kind: input, shape index: {}]
  %s2 = inlined_call_operand.vmem [shape: bf16[2,32,16], index: 2, kind: input, shape index: {}]
  %s3 = inlined_call_operand.vmem [shape: bf16[2,32,16], index: 3, kind: input, shape index: {}]
  %s4 = inlined_call_operand.vmem [shape: bf16[2,16,32], index: 4, kind: input, shape index: {}]
  %s5 = inlined_call_operand.vmem [shape: f32[1,32], index: 5, kind: input, shape index: {}]
  %s6 = inlined_call_operand.hbm [shape: f32[2,8,32], index: 6, kind: output, shape index: {}]
  %s7 = sld [smem:[#allocation0]]
  $region57: #{tpu_custom_call.1} parent=0
    _
  %s9 = ssub.s32 1, %s7
  %s10 = scalar_select 0, %s9, %s7
  $region1: #{tpu_custom_call.1} parent=0
    #allocation2 [shape = 'u8[8192]{0}', space=vmem, size = 0x2000, scoped, tag = 'output window, operand 0']
    #allocation3 [shape = 's32[2]{0}', space=sflag, size = 0x8, scoped, tag = 'scoped memory for tpu_custom_call.1']
    %11 = vsyncpa [#allocation3], 0
    %s12 = scalar_lea.sflag [#allocation3], 1
    %13 = vsyncpa %s12, 0
    loop: start=0, step=1, limit=4
    $region2: #{tpu_custom_call.1} parent=1 // loop_pre_header
      _
    $region3: #{tpu_custom_call.1} parent=1 // loop_header
      %s15 = sphi 0, %s19
      %p16 = scmp.ge.s32.totalorder %s15, 4
      %s22 = sphi 0, %s34
      %s23 = sphi 0, %s30
      %s24 = sphi 0, %s22
      %s25 = sphi 0, %s23
      %s26 = sphi 0, %s24
      %s27 = sphi 0, %s25
      %s37 = sphi 0, %s39
      %s40 = sphi 0, %s37
      %s41 = sphi 0, %s40
      %s57 = sphi 0, %s41
      %s65 = sphi 0, %s67
      %s68 = sphi 0, %s65
      %s69 = sphi 0, %s68
      %s85 = sphi 0, %s69
      %s89 = sphi 0, %s89
      %s91 = sphi 0, %s89
      %s92 = sphi 0, %s91
      %s106 = sphi 0, %s92
      %s110 = sphi 0, %s110
      %s112 = sphi 0, %s110
      %s113 = sphi 0, %s112
      %s127 = sphi 0, %s113
      %s131 = sphi 0, %s131
      %s133 = sphi 0, %s131
      %s134 = sphi 0, %s133
      %s148 = sphi 0, %s134
      %s152 = sphi 0, %s152
      %s154 = sphi 0, %s152
      %s155 = sphi 0, %s154
      %s169 = sphi 0, %s155
      %s177 = sphi 0, %s179
      %s180 = sphi 0, %s177
      %s181 = sphi 0, %s180
      %s197 = sphi 0, %s181
    $region4: #{tpu_custom_call.1} parent=1 // loop_header_branch
      %18 = sbr.rel (%p16) target = $region8
    $region5: #{tpu_custom_call.1} parent=1 // loop_body
      %s20 = ssub.s32 %s15, 1
      %s21 = ssub.s32 %s15, 2
      %s28 = sadd.s32 1, %s23
      %p29 = scmp.ge.s32.totalorder %s28, 1
      %s30 = scalar_select %p29, 0, %s28
      %s31 = sadd.s32 1, %s22
      %s32 = scalar_select %p29, %s31, %s22
      %p33 = scmp.ge.s32.totalorder %s32, 2
      %s34 = scalar_select %p33, 0, %s32
      %s35 = ssub.s32 %s22, %s34
      %p36 = scmp.eq.s32.totalorder %s35, 0
      %s38 = sadd.s32 %s37, 1
      %s39 = scalar_select %p36, %s37, %s38
      %p42 = pneg %p36
      %p43 = scmp.eq.s32.totalorder %s15, 1
      %p44 = por %p42, %p43
      %p45 = scmp.ne.s32.totalorder %s37, %s40
      %p46 = scmp.eq.s32.totalorder %s15, 0
      %p47 = por %p45, %p46
      %p48 = scmp.ne.s32.totalorder %s37, %s40
      %p49 = scmp.eq.s32.totalorder %s20, 1
      %p50 = por %p48, %p49
      %p51 = scmp.ne.s32.totalorder %s40, %s41
      %p52 = scmp.eq.s32.totalorder %s20, 0
      %p53 = por %p51, %p52
      %p54 = scmp.ne.s32.totalorder %s40, %s41
      %p55 = scmp.eq.s32.totalorder %s21, 1
      %p56 = por %p54, %p55
      %p58 = scmp.ne.s32.totalorder %s41, %s57
      %p59 = scmp.eq.s32.totalorder %s21, 0
      %p60 = por %p58, %p59
      %s61 = ssub.s32 %s22, %s34
      %s62 = ssub.s32 %s23, %s30
      %s63 = sor.u32 %s61, %s62
      %p64 = scmp.eq.s32.totalorder %s63, 0
      %s66 = sadd.s32 %s65, 1
      %s67 = scalar_select %p64, %s65, %s66
      %p70 = pneg %p64
      %p71 = scmp.eq.s32.totalorder %s15, 1
      %p72 = por %p70, %p71
      %p73 = scmp.ne.s32.totalorder %s65, %s68
      %p74 = scmp.eq.s32.totalorder %s15, 0
      %p75 = por %p73, %p74
      %p76 = scmp.ne.s32.totalorder %s65, %s68
      %p77 = scmp.eq.s32.totalorder %s20, 1
      %p78 = por %p76, %p77
      %p79 = scmp.ne.s32.totalorder %s68, %s69
      %p80 = scmp.eq.s32.totalorder %s20, 0
      %p81 = por %p79, %p80
      %p82 = scmp.ne.s32.totalorder %s68, %s69
      %p83 = scmp.eq.s32.totalorder %s21, 1
      %p84 = por %p82, %p83
      %p86 = scmp.ne.s32.totalorder %s69, %s85
      %p87 = scmp.eq.s32.totalorder %s21, 0
      %p88 = por %p86, %p87
      %s90 = sadd.s32 %s89, 1
      %p93 = scmp.eq.s32.totalorder %s15, 1
      %p94 = scmp.ne.s32.totalorder %s89, %s91
      %p95 = scmp.eq.s32.totalorder %s15, 0
      %p96 = por %p94, %p95
      %p97 = scmp.ne.s32.totalorder %s89, %s91
      %p98 = scmp.eq.s32.totalorder %s20, 1
      %p99 = por %p97, %p98
      %p100 = scmp.ne.s32.totalorder %s91, %s92
      %p101 = scmp.eq.s32.totalorder %s20, 0
      %p102 = por %p100, %p101
      %p103 = scmp.ne.s32.totalorder %s91, %s92
      %p104 = scmp.eq.s32.totalorder %s21, 1
      %p105 = por %p103, %p104
      %p107 = scmp.ne.s32.totalorder %s92, %s106
      %p108 = scmp.eq.s32.totalorder %s21, 0
      %p109 = por %p107, %p108
      %s111 = sadd.s32 %s110, 1
      %p114 = scmp.eq.s32.totalorder %s15, 1
      %p115 = scmp.ne.s32.totalorder %s110, %s112
      %p116 = scmp.eq.s32.totalorder %s15, 0
      %p117 = por %p115, %p116
      %p118 = scmp.ne.s32.totalorder %s110, %s112
      %p119 = scmp.eq.s32.totalorder %s20, 1
      %p120 = por %p118, %p119
      %p121 = scmp.ne.s32.totalorder %s112, %s113
      %p122 = scmp.eq.s32.totalorder %s20, 0
      %p123 = por %p121, %p122
      %p124 = scmp.ne.s32.totalorder %s112, %s113
      %p125 = scmp.eq.s32.totalorder %s21, 1
      %p126 = por %p124, %p125
      %p128 = scmp.ne.s32.totalorder %s113, %s127
      %p129 = scmp.eq.s32.totalorder %s21, 0
      %p130 = por %p128, %p129
      %s132 = sadd.s32 %s131, 1
      %p135 = scmp.eq.s32.totalorder %s15, 1
      %p136 = scmp.ne.s32.totalorder %s131, %s133
      %p137 = scmp.eq.s32.totalorder %s15, 0
      %p138 = por %p136, %p137
      %p139 = scmp.ne.s32.totalorder %s131, %s133
      %p140 = scmp.eq.s32.totalorder %s20, 1
      %p141 = por %p139, %p140
      %p142 = scmp.ne.s32.totalorder %s133, %s134
      %p143 = scmp.eq.s32.totalorder %s20, 0
      %p144 = por %p142, %p143
      %p145 = scmp.ne.s32.totalorder %s133, %s134
      %p146 = scmp.eq.s32.totalorder %s21, 1
      %p147 = por %p145, %p146
      %p149 = scmp.ne.s32.totalorder %s134, %s148
      %p150 = scmp.eq.s32.totalorder %s21, 0
      %p151 = por %p149, %p150
      %s153 = sadd.s32 %s152, 1
      %p156 = scmp.eq.s32.totalorder %s15, 1
      %p157 = scmp.ne.s32.totalorder %s152, %s154
      %p158 = scmp.eq.s32.totalorder %s15, 0
      %p159 = por %p157, %p158
      %p160 = scmp.ne.s32.totalorder %s152, %s154
      %p161 = scmp.eq.s32.totalorder %s20, 1
      %p162 = por %p160, %p161
      %p163 = scmp.ne.s32.totalorder %s154, %s155
      %p164 = scmp.eq.s32.totalorder %s20, 0
      %p165 = por %p163, %p164
      %p166 = scmp.ne.s32.totalorder %s154, %s155
      %p167 = scmp.eq.s32.totalorder %s21, 1
      %p168 = por %p166, %p167
      %p170 = scmp.ne.s32.totalorder %s155, %s169
      %p171 = scmp.eq.s32.totalorder %s21, 0
      %p172 = por %p170, %p171
      %s173 = ssub.s32 %s22, %s34
      %s174 = ssub.s32 %s23, %s30
      %s175 = sor.u32 %s173, %s174
      %p176 = scmp.eq.s32.totalorder %s175, 0
      %s178 = sadd.s32 %s177, 1
      %s179 = scalar_select %p176, %s177, %s178
      %p182 = pneg %p176
      %p183 = scmp.eq.s32.totalorder %s15, 1
      %p184 = por %p182, %p183
      %p185 = scmp.ne.s32.totalorder %s177, %s180
      %p186 = scmp.eq.s32.totalorder %s15, 0
      %p187 = por %p185, %p186
      %p188 = scmp.ne.s32.totalorder %s177, %s180
      %p189 = scmp.eq.s32.totalorder %s20, 1
      %p190 = por %p188, %p189
      %p191 = scmp.ne.s32.totalorder %s180, %s181
      %p192 = scmp.eq.s32.totalorder %s20, 0
      %p193 = por %p191, %p192
      %p194 = scmp.ne.s32.totalorder %s180, %s181
      %p195 = scmp.eq.s32.totalorder %s21, 1
      %p196 = por %p194, %p195
      %p198 = scmp.ne.s32.totalorder %s181, %s197
      %p199 = scmp.eq.s32.totalorder %s21, 0
      %p200 = por %p198, %p199
      %p201 = scmp.le.s32.totalorder 1, %s15
      %p202 = scmp.lt.s32.totalorder %s15, 3
      %p203 = pnand %p201, %p202
      %p204 = pneg %p203
      // Predicated region
      $region9: #{tpu_custom_call.1} parent=5 // pred_check
        _
      $region10: #{tpu_custom_call.1} parent=5 // pred_check_branch
        %206 = sbr.rel (%p203) target = $region12
      $region11: #{tpu_custom_call.1} parent=5 // pred_region
        %s207 = ssub.s32 %s15, 1
        // Predicated region
        $region13: #{tpu_custom_call.1} parent=11 // pred_check
          %p208 = pneg %p102
        $region14: #{tpu_custom_call.1} parent=11 // pred_check_branch
          %210 = sbr.rel (%p208) target = $region16
        $region15: #{tpu_custom_call.1} parent=11 // pred_region
          _
        $region16: #{tpu_custom_call.1} parent=11 // pred_fallthru
          _
        // Predicated region
        $region17: #{tpu_custom_call.1} parent=11 // pred_check
          %p211 = pneg %p123
        $region18: #{tpu_custom_call.1} parent=11 // pred_check_branch
          %213 = sbr.rel (%p211) target = $region20
        $region19: #{tpu_custom_call.1} parent=11 // pred_region
          _
        $region20: #{tpu_custom_call.1} parent=11 // pred_fallthru
          _
        // Predicated region
        $region21: #{tpu_custom_call.1} parent=11 // pred_check
          %p214 = pneg %p144
        $region22: #{tpu_custom_call.1} parent=11 // pred_check_branch
          %216 = sbr.rel (%p214) target = $region24
        $region23: #{tpu_custom_call.1} parent=11 // pred_region
          _
        $region24: #{tpu_custom_call.1} parent=11 // pred_fallthru
          _
        // Predicated region
        $region25: #{tpu_custom_call.1} parent=11 // pred_check
          %p217 = pneg %p165
        $region26: #{tpu_custom_call.1} parent=11 // pred_check_branch
          %219 = sbr.rel (%p217) target = $region28
        $region27: #{tpu_custom_call.1} parent=11 // pred_region
          _
        $region28: #{tpu_custom_call.1} parent=11 // pred_fallthru
          _
      $region12: #{tpu_custom_call.1} parent=5 // pred_fallthru
        _
      %p220 = scmp.lt.s32.totalorder %s15, 2
      // Predicated region
      $region29: #{tpu_custom_call.1} parent=5 // pred_check
        %p221 = pneg %p220
      $region30: #{tpu_custom_call.1} parent=5 // pred_check_branch
        %223 = sbr.rel (%p221) target = $region32
      $region31: #{tpu_custom_call.1} parent=5 // pred_region
        // Predicated region
        $region33: #{tpu_custom_call.1} parent=31 // pred_check
          %p224 = pneg %p47
        $region34: #{tpu_custom_call.1} parent=31 // pred_check_branch
          %226 = sbr.rel (%p224) target = $region36
        $region35: #{tpu_custom_call.1} parent=31 // pred_region
          %p227 = scmp.lt.s32.totalorder %s22, 1
          %s228 = scalar_select %p227, %s22, 1
          %s229 = smul.addr %s228, 4
          %s230 = scalar_lea.vmem %s0, %s229
        $region36: #{tpu_custom_call.1} parent=31 // pred_fallthru
          _
        // Predicated region
        $region37: #{tpu_custom_call.1} parent=31 // pred_check
          %p231 = pneg %p75
        $region38: #{tpu_custom_call.1} parent=31 // pred_check_branch
          %233 = sbr.rel (%p231) target = $region40
        $region39: #{tpu_custom_call.1} parent=31 // pred_region
          %p234 = scmp.lt.s32.totalorder %s22, 1
          %s235 = scalar_select %p234, %s22, 1
          %p236 = scmp.lt.s32.totalorder %s23, 0
          %s237 = scalar_select %p236, %s23, 0
          %s238 = sadd.s32 %s237, %s235
          %s239 = smul.addr %s238, 4
          %s240 = scalar_lea.vmem %s1, %s239
        $region40: #{tpu_custom_call.1} parent=31 // pred_fallthru
          _
      $region32: #{tpu_custom_call.1} parent=5 // pred_fallthru
        _
      %p241 = scmp.le.s32.totalorder 1, %s15
      %p242 = scmp.lt.s32.totalorder %s15, 3
      %p243 = pnand %p241, %p242
      %p244 = pneg %p243
      // Predicated region
      $region41: #{tpu_custom_call.1} parent=5 // pred_check
        _
      $region42: #{tpu_custom_call.1} parent=5 // pred_check_branch
        %246 = sbr.rel (%p243) target = $region44
      $region43: #{tpu_custom_call.1} parent=5 // pred_region
        %s247 = ssub.s32 %s15, 1
        %p248 = scmp.lt.s32.totalorder %s24, 1
        %s249 = scalar_select %p248, %s24, 1
        %s250 = smul.addr %s249, 4
        %s251 = scalar_lea.vmem %s0, %s250
        %p252 = pneg %p53
        %p253 = pneg %p50
        %p254 = scmp.lt.s32.totalorder %s24, 1
        %s255 = scalar_select %p254, %s24, 1
        %p256 = scmp.lt.s32.totalorder %s25, 0
        %s257 = scalar_select %p256, %s25, 0
        %s258 = sadd.s32 %s257, %s255
        %s259 = smul.addr %s258, 4
        %s260 = scalar_lea.vmem %s1, %s259
        %p261 = pneg %p81
        %p262 = pneg %p78
        %p263 = pneg %p102
        %p264 = pneg %p99
        %p265 = pneg %p123
        %p266 = pneg %p120
        %p267 = pneg %p144
        %p268 = pneg %p141
        %p269 = pneg %p165
        %p270 = pneg %p162
        %p271 = pneg %p193
        %p272 = pneg %p190
        %s273 = sand.u32 %s180, 1
        %s274 = scalar_lea.sflag [#allocation3], %s273
        %s275 = sand.u32 %s180, 1
        %s276 = smul.addr %s275, 8
        %s277 = scalar_lea.vmem [#allocation2], %s276
        %p278 = scmp.lt.s32.totalorder %s24, 1
        %s279 = scalar_select %p278, %s24, 1
        %s280 = smul.addr %s279, 4
        %s281 = scalar_lea.vmem %s0, %s280
        %p282 = scmp.lt.s32.totalorder %s24, 1
        %s283 = scalar_select %p282, %s24, 1
        %p284 = scmp.lt.s32.totalorder %s25, 0
        %s285 = scalar_select %p284, %s25, 0
        %s286 = sadd.s32 %s285, %s283
        %s287 = smul.addr %s286, 4
        %s288 = scalar_lea.vmem %s1, %s287
        %v290 = vld [vmem:[%s2] sm:$0xf]
        %v291 = vld [vmem:[%s2 + $0x4] sm:$0xf]
        %v292 = vld [vmem:[%s2 + $0x8] sm:$0xf]
        %v293 = vld [vmem:[%s2 + $0xc] sm:$0xf]
        %v294 = vld [vmem:[%s2 + $0x10] sm:$0xf]
        %v295 = vld [vmem:[%s2 + $0x14] sm:$0xf]
        %v296 = vld [vmem:[%s2 + $0x18] sm:$0xf]
        %v297 = vld [vmem:[%s2 + $0x1c] sm:$0xf]
        %v298 = vld [vmem:[%s3] sm:$0xf]
        %v299 = vld [vmem:[%s3 + $0x4] sm:$0xf]
        %v300 = vld [vmem:[%s3 + $0x8] sm:$0xf]
        %v301 = vld [vmem:[%s3 + $0xc] sm:$0xf]
        %v302 = vld [vmem:[%s3 + $0x10] sm:$0xf]
        %v303 = vld [vmem:[%s3 + $0x14] sm:$0xf]
        %v304 = vld [vmem:[%s3 + $0x18] sm:$0xf]
        %v305 = vld [vmem:[%s3 + $0x1c] sm:$0xf]
        %v306 = vld [vmem:[%s4] sm:$0xf]
        %v307 = vld [vmem:[%s4 + $0x4] sm:$0xf]
        %v308 = vld [vmem:[%s4 + $0x8] sm:$0xf]
        %v309 = vld [vmem:[%s4 + $0xc] sm:$0xf]
        %v310 = vld [vmem:[%s5] sm:$0x1]
        %v311 = vld [vmem:[%s281] sm:$0xf]
        %v312 = vld [vmem:[%s288] sm:$0xf]
        %v317 = vunpack.c.l.b16 %v290
        %v318 = vunpack.c.l.b16 %v291
        %v319 = vunpack.c.l.b16 %v292
        %v320 = vunpack.c.l.b16 %v293
        %v321 = vpack.c.b16 %v318, %v317
        %v322 = vpack.c.b16 %v320, %v319
        %vm325 = vcmask 261120
        %v327 = vsel %vm325, %v311, 0
        %329 = vmatprep.subr.bf16.mxu0 0
        %330 = vmatpush1.bf16.msra.mxu0 %v321
        %331 = vmatprep.subr.bf16.mxu0 0
        %332 = vmatpush1.bf16.msra.mxu0 %v322
        %333 = vmatprep.subr.bf16.mxu0 0
        %334 = vmatpush1.bf16.msra.mxu0 0
        %335 = vmatprep.subr.bf16.mxu0 0
        %336 = vmatpush1.bf16.msra.mxu0 0
        %337 = vmatprep.subr.bf16.mxu0 0
        %338 = vmatpush1.bf16.msra.mxu0 0
        %339 = vmatprep.subr.bf16.mxu0 0
        %340 = vmatpush1.bf16.msra.mxu0 0
        %341 = vmatprep.subr.bf16.mxu0 0
        %342 = vmatpush1.bf16.msra.mxu0 0
        %343 = vmatprep.subr.bf16.mxu0 0
        %344 = vmatpush1.bf16.msra.mxu0 0
        %345 = vmatprep.subr.bf16.mxu0 0
        %346 = vmatpush1.bf16.msra.mxu0 0
        %347 = vmatprep.subr.bf16.mxu0 0
        %348 = vmatpush1.bf16.msra.mxu0 0
        %349 = vmatprep.subr.bf16.mxu0 0
        %350 = vmatpush1.bf16.msra.mxu0 0
        %351 = vmatprep.subr.bf16.mxu0 0
        %352 = vmatpush1.bf16.msra.mxu0 0
        %353 = vmatprep.subr.bf16.mxu0 0
        %354 = vmatpush1.bf16.msra.mxu0 0
        %355 = vmatprep.subr.bf16.mxu0 0
        %356 = vmatpush1.bf16.msra.mxu0 0
        %357 = vmatprep.subr.bf16.mxu0 0
        %358 = vmatpush1.bf16.msra.mxu0 0
        %359 = vmatprep.subr.bf16.mxu0 0
        %360 = vmatpush1.bf16.msra.mxu0 0
        %361 = vmatprep.mubr.bf16.mxu0 0
        %362 = vmatmul.mubr.bf16.gmra.mrb[0].mxu0 %v327
        %v363 = vpop.f32.mrb[0].mxu0
        %v364 = vadd.f32 0.0, %v363
        %v365 = vpop.f32.mrb[0].mxu0
        %v366 = vpop.f32.mrb[0].mxu0
        %v367 = vpop.f32.mrb[0].mxu0
        %368 = vdwg.mxu0
        %v373 = vunpack.c.l.b16 %v294
        %v374 = vunpack.c.l.b16 %v295
        %v375 = vunpack.c.l.b16 %v296
        %v376 = vunpack.c.l.b16 %v297
        %v377 = vpack.c.b16 %v374, %v373
        %v378 = vpack.c.b16 %v376, %v375
        %381 = vmatprep.subr.bf16.mxu0 0
        %382 = vmatpush1.bf16.msra.mxu0 %v377
        %383 = vmatprep.subr.bf16.mxu0 0
        %384 = vmatpush1.bf16.msra.mxu0 %v378
        %385 = vmatprep.subr.bf16.mxu0 0
        %386 = vmatpush1.bf16.msra.mxu0 0
        %387 = vmatprep.subr.bf16.mxu0 0
        %388 = vmatpush1.bf16.msra.mxu0 0
        %389 = vmatprep.subr.bf16.mxu0 0
        %390 = vmatpush1.bf16.msra.mxu0 0
        %391 = vmatprep.subr.bf16.mxu0 0
        %392 = vmatpush1.bf16.msra.mxu0 0
        %393 = vmatprep.subr.bf16.mxu0 0
        %394 = vmatpush1.bf16.msra.mxu0 0
        %395 = vmatprep.subr.bf16.mxu0 0
        %396 = vmatpush1.bf16.msra.mxu0 0
        %397 = vmatprep.subr.bf16.mxu0 0
        %398 = vmatpush1.bf16.msra.mxu0 0
        %399 = vmatprep.subr.bf16.mxu0 0
        %400 = vmatpush1.bf16.msra.mxu0 0
        %401 = vmatprep.subr.bf16.mxu0 0
        %402 = vmatpush1.bf16.msra.mxu0 0
        %403 = vmatprep.subr.bf16.mxu0 0
        %404 = vmatpush1.bf16.msra.mxu0 0
        %405 = vmatprep.subr.bf16.mxu0 0
        %406 = vmatpush1.bf16.msra.mxu0 0
        %407 = vmatprep.subr.bf16.mxu0 0
        %408 = vmatpush1.bf16.msra.mxu0 0
        %409 = vmatprep.subr.bf16.mxu0 0
        %410 = vmatpush1.bf16.msra.mxu0 0
        %411 = vmatprep.subr.bf16.mxu0 0
        %412 = vmatpush1.bf16.msra.mxu0 0
        %413 = vmatprep.mubr.bf16.mxu0 0
        %414 = vmatmul.mubr.bf16.gmra.mrb[0].mxu0 %v327
        %v415 = vpop.f32.mrb[0].mxu0
        %v416 = vadd.f32 0.0, %v415
        %v417 = vpop.f32.mrb[0].mxu0
        %v418 = vpop.f32.mrb[0].mxu0
        %v419 = vpop.f32.mrb[0].mxu0
        %420 = vdwg.mxu0
        %v425 = vunpack.c.l.b16 %v298
        %v426 = vunpack.c.l.b16 %v299
        %v427 = vunpack.c.l.b16 %v300
        %v428 = vunpack.c.l.b16 %v301
        %v429 = vpack.c.b16 %v426, %v425
        %v430 = vpack.c.b16 %v428, %v427
        %v434 = vsel %vm325, %v312, 0
        %436 = vmatprep.subr.bf16.mxu0 0
        %437 = vmatpush1.bf16.msra.mxu0 %v429
        %438 = vmatprep.subr.bf16.mxu0 0
        %439 = vmatpush1.bf16.msra.mxu0 %v430
        %440 = vmatprep.subr.bf16.mxu0 0
        %441 = vmatpush1.bf16.msra.mxu0 0
        %442 = vmatprep.subr.bf16.mxu0 0
        %443 = vmatpush1.bf16.msra.mxu0 0
        %444 = vmatprep.subr.bf16.mxu0 0
        %445 = vmatpush1.bf16.msra.mxu0 0
        %446 = vmatprep.subr.bf16.mxu0 0
        %447 = vmatpush1.bf16.msra.mxu0 0
        %448 = vmatprep.subr.bf16.mxu0 0
        %449 = vmatpush1.bf16.msra.mxu0 0
        %450 = vmatprep.subr.bf16.mxu0 0
        %451 = vmatpush1.bf16.msra.mxu0 0
        %452 = vmatprep.subr.bf16.mxu0 0
        %453 = vmatpush1.bf16.msra.mxu0 0
        %454 = vmatprep.subr.bf16.mxu0 0
        %455 = vmatpush1.bf16.msra.mxu0 0
        %456 = vmatprep.subr.bf16.mxu0 0
        %457 = vmatpush1.bf16.msra.mxu0 0
        %458 = vmatprep.subr.bf16.mxu0 0
        %459 = vmatpush1.bf16.msra.mxu0 0
        %460 = vmatprep.subr.bf16.mxu0 0
        %461 = vmatpush1.bf16.msra.mxu0 0
        %462 = vmatprep.subr.bf16.mxu0 0
        %463 = vmatpush1.bf16.msra.mxu0 0
        %464 = vmatprep.subr.bf16.mxu0 0
        %465 = vmatpush1.bf16.msra.mxu0 0
        %466 = vmatprep.subr.bf16.mxu0 0
        %467 = vmatpush1.bf16.msra.mxu0 0
        %468 = vmatprep.mubr.bf16.mxu0 0
        %469 = vmatmul.mubr.bf16.gmra.mrb[0].mxu0 %v434
        %v470 = vpop.f32.mrb[0].mxu0
        %v471 = vadd.f32 0.0, %v470
        %v472 = vpop.f32.mrb[0].mxu0
        %v473 = vpop.f32.mrb[0].mxu0
        %v474 = vpop.f32.mrb[0].mxu0
        %475 = vdwg.mxu0
        %v480 = vunpack.c.l.b16 %v302
        %v481 = vunpack.c.l.b16 %v303
        %v482 = vunpack.c.l.b16 %v304
        %v483 = vunpack.c.l.b16 %v305
        %v484 = vpack.c.b16 %v481, %v480
        %v485 = vpack.c.b16 %v483, %v482
        %488 = vmatprep.subr.bf16.mxu0 0
        %489 = vmatpush1.bf16.msra.mxu0 %v484
        %490 = vmatprep.subr.bf16.mxu0 0
        %491 = vmatpush1.bf16.msra.mxu0 %v485
        %492 = vmatprep.subr.bf16.mxu0 0
        %493 = vmatpush1.bf16.msra.mxu0 0
        %494 = vmatprep.subr.bf16.mxu0 0
        %495 = vmatpush1.bf16.msra.mxu0 0
        %496 = vmatprep.subr.bf16.mxu0 0
        %497 = vmatpush1.bf16.msra.mxu0 0
        %498 = vmatprep.subr.bf16.mxu0 0
        %499 = vmatpush1.bf16.msra.mxu0 0
        %500 = vmatprep.subr.bf16.mxu0 0
        %501 = vmatpush1.bf16.msra.mxu0 0
        %502 = vmatprep.subr.bf16.mxu0 0
        %503 = vmatpush1.bf16.msra.mxu0 0
        %504 = vmatprep.subr.bf16.mxu0 0
        %505 = vmatpush1.bf16.msra.mxu0 0
        %506 = vmatprep.subr.bf16.mxu0 0
        %507 = vmatpush1.bf16.msra.mxu0 0
        %508 = vmatprep.subr.bf16.mxu0 0
        %509 = vmatpush1.bf16.msra.mxu0 0
        %510 = vmatprep.subr.bf16.mxu0 0
        %511 = vmatpush1.bf16.msra.mxu0 0
        %512 = vmatprep.subr.bf16.mxu0 0
        %513 = vmatpush1.bf16.msra.mxu0 0
        %514 = vmatprep.subr.bf16.mxu0 0
        %515 = vmatpush1.bf16.msra.mxu0 0
        %516 = vmatprep.subr.bf16.mxu0 0
        %517 = vmatpush1.bf16.msra.mxu0 0
        %518 = vmatprep.subr.bf16.mxu0 0
        %519 = vmatpush1.bf16.msra.mxu0 0
        %520 = vmatprep.mubr.bf16.mxu0 0
        %521 = vmatmul.mubr.bf16.gmra.mrb[0].mxu0 %v434
        %v522 = vpop.f32.mrb[0].mxu0
        %v523 = vadd.f32 0.0, %v522
        %v524 = vpop.f32.mrb[0].mxu0
        %v525 = vpop.f32.mrb[0].mxu0
        %v526 = vpop.f32.mrb[0].mxu0
        %527 = vdwg.mxu0
        %v528 = vpack.c.bf16 %v364, %v364
        %v529 = vpack.c.bf16 %v416, %v416
        %v530 = vpack.c.bf16 %v471, %v471
        %v531 = vpack.c.bf16 %v523, %v523
        %vm532 = vcmask 130048
        %v534 = vsel %vm532, %v530, 0
        %v537 = vsel %vm532, %v528, 0
        %539 = vmatprep.subr.bf16.mxu0 0
        %540 = vmatpush1.bf16.xpose.msra.mxu0 %v537
        %541 = vmatprep.subr.bf16.mxu0 0
        %542 = vmatpush1.bf16.xpose.msra.mxu0 0
        %543 = vmatprep.subr.bf16.mxu0 0
        %544 = vmatpush1.bf16.xpose.msra.mxu0 0
        %545 = vmatprep.subr.bf16.mxu0 0
        %546 = vmatpush1.bf16.xpose.msra.mxu0 0
        %547 = vmatprep.subr.bf16.mxu0 0
        %548 = vmatpush1.bf16.xpose.msra.mxu0 0
        %549 = vmatprep.subr.bf16.mxu0 0
        %550 = vmatpush1.bf16.xpose.msra.mxu0 0
        %551 = vmatprep.subr.bf16.mxu0 0
        %552 = vmatpush1.bf16.xpose.msra.mxu0 0
        %553 = vmatprep.subr.bf16.mxu0 0
        %554 = vmatpush1.bf16.xpose.msra.mxu0 0
        %555 = vmatprep.subr.bf16.mxu0 0
        %556 = vmatpush1.bf16.xpose.msra.mxu0 0
        %557 = vmatprep.subr.bf16.mxu0 0
        %558 = vmatpush1.bf16.xpose.msra.mxu0 0
        %559 = vmatprep.subr.bf16.mxu0 0
        %560 = vmatpush1.bf16.xpose.msra.mxu0 0
        %561 = vmatprep.subr.bf16.mxu0 0
        %562 = vmatpush1.bf16.xpose.msra.mxu0 0
        %563 = vmatprep.subr.bf16.mxu0 0
        %564 = vmatpush1.bf16.xpose.msra.mxu0 0
        %565 = vmatprep.subr.bf16.mxu0 0
        %566 = vmatpush1.bf16.xpose.msra.mxu0 0
        %567 = vmatprep.subr.bf16.mxu0 0
        %568 = vmatpush1.bf16.xpose.msra.mxu0 0
        %569 = vmatprep.subr.bf16.mxu0 0
        %570 = vmatpush1.bf16.xpose.msra.mxu0 0
        %571 = vmatprep.mubr.bf16.mxu0 0
        %572 = vmatmul.mubr.bf16.gmra.mrb[0].mxu0 %v534
        %v573 = vpop.f32.mrb[0].mxu0
        %v574 = vadd.f32 0.0, %v573
        %v575 = vpop.f32.mrb[0].mxu0
        %v576 = vpop.f32.mrb[0].mxu0
        %v577 = vpop.f32.mrb[0].mxu0
        %578 = vdwg.mxu0
        %v580 = vsel %vm532, %v531, 0
        %v583 = vsel %vm532, %v529, 0
        %585 = vmatprep.subr.bf16.mxu0 0
        %586 = vmatpush1.bf16.xpose.msra.mxu0 %v583
        %587 = vmatprep.subr.bf16.mxu0 0
        %588 = vmatpush1.bf16.xpose.msra.mxu0 0
        %589 = vmatprep.subr.bf16.mxu0 0
        %590 = vmatpush1.bf16.xpose.msra.mxu0 0
        %591 = vmatprep.subr.bf16.mxu0 0
        %592 = vmatpush1.bf16.xpose.msra.mxu0 0
        %593 = vmatprep.subr.bf16.mxu0 0
        %594 = vmatpush1.bf16.xpose.msra.mxu0 0
        %595 = vmatprep.subr.bf16.mxu0 0
        %596 = vmatpush1.bf16.xpose.msra.mxu0 0
        %597 = vmatprep.subr.bf16.mxu0 0
        %598 = vmatpush1.bf16.xpose.msra.mxu0 0
        %599 = vmatprep.subr.bf16.mxu0 0
        %600 = vmatpush1.bf16.xpose.msra.mxu0 0
        %601 = vmatprep.subr.bf16.mxu0 0
        %602 = vmatpush1.bf16.xpose.msra.mxu0 0
        %603 = vmatprep.subr.bf16.mxu0 0
        %604 = vmatpush1.bf16.xpose.msra.mxu0 0
        %605 = vmatprep.subr.bf16.mxu0 0
        %606 = vmatpush1.bf16.xpose.msra.mxu0 0
        %607 = vmatprep.subr.bf16.mxu0 0
        %608 = vmatpush1.bf16.xpose.msra.mxu0 0
        %609 = vmatprep.subr.bf16.mxu0 0
        %610 = vmatpush1.bf16.xpose.msra.mxu0 0
        %611 = vmatprep.subr.bf16.mxu0 0
        %612 = vmatpush1.bf16.xpose.msra.mxu0 0
        %613 = vmatprep.subr.bf16.mxu0 0
        %614 = vmatpush1.bf16.xpose.msra.mxu0 0
        %615 = vmatprep.subr.bf16.mxu0 0
        %616 = vmatpush1.bf16.xpose.msra.mxu0 0
        %617 = vmatprep.mubr.bf16.mxu0 0
        %618 = vmatmul.mubr.bf16.gmra.mrb[0].mxu0 %v580
        %v619 = vpop.f32.mrb[0].mxu0
        %v620 = vadd.f32 0.0, %v619
        %v621 = vpop.f32.mrb[0].mxu0
        %v622 = vpop.f32.mrb[0].mxu0
        %v623 = vpop.f32.mrb[0].mxu0
        %624 = vdwg.mxu0
        %vm625 = vcmask 64512
        %v626 = vsel %vm625, %v574, -inf
        %627 = vmax.xlane.f32.xlu0 %v626
        %v628 = vpop.xlane.xlu0 %627
        %v629 = vsel %vm625, %v620, -inf
        %630 = vmax.xlane.f32.xlu0 %v629
        %v631 = vpop.xlane.xlu0 %630
        %v632 = vsub.f32 %v574, %v628
        %v633 = vsub.f32 %v620, %v631
        %v634 = vmul.f32 %v632, 1.442695
        %v635 = vpow.pop %v634
        %v636 = vmul.f32 %v633, 1.442695
        %v637 = vpow.pop %v636
        %v638 = vsel %vm625, %v635, 0.0
        %639 = vadd.xlane.f32.xlu0 %v638
        %v640 = vpop.xlane.xlu0 %639
        %v641 = vsel %vm625, %v637, 0.0
        %642 = vadd.xlane.f32.xlu0 %v641
        %v643 = vpop.xlane.xlu0 %642
        %v644 = vrcp.pop %v640
        %v645 = vrcp.pop %v643
        %v646 = vmul.f32 %v635, %v644
        %v647 = vmul.f32 %v637, %v645
        %v648 = vpack.c.bf16 %v646, %v646
        %v649 = vpack.c.bf16 %v647, %v647
        %v651 = vsel %vm625, %v648, 0
        %vm653 = vcmask 1043456
        %v654 = vsel %vm653, %v528, 0
        %656 = vmatprep.subr.bf16.mxu0 0
        %657 = vmatpush1.bf16.msra.mxu0 %v654
        %658 = vmatprep.subr.bf16.mxu0 0
        %659 = vmatpush1.bf16.msra.mxu0 0
        %660 = vmatprep.subr.bf16.mxu0 0
        %661 = vmatpush1.bf16.msra.mxu0 0
        %662 = vmatprep.subr.bf16.mxu0 0
        %663 = vmatpush1.bf16.msra.mxu0 0
        %664 = vmatprep.subr.bf16.mxu0 0
        %665 = vmatpush1.bf16.msra.mxu0 0
        %666 = vmatprep.subr.bf16.mxu0 0
        %667 = vmatpush1.bf16.msra.mxu0 0
        %668 = vmatprep.subr.bf16.mxu0 0
        %669 = vmatpush1.bf16.msra.mxu0 0
        %670 = vmatprep.subr.bf16.mxu0 0
        %671 = vmatpush1.bf16.msra.mxu0 0
        %672 = vmatprep.subr.bf16.mxu0 0
        %673 = vmatpush1.bf16.msra.mxu0 0
        %674 = vmatprep.subr.bf16.mxu0 0
        %675 = vmatpush1.bf16.msra.mxu0 0
        %676 = vmatprep.subr.bf16.mxu0 0
        %677 = vmatpush1.bf16.msra.mxu0 0
        %678 = vmatprep.subr.bf16.mxu0 0
        %679 = vmatpush1.bf16.msra.mxu0 0
        %680 = vmatprep.subr.bf16.mxu0 0
        %681 = vmatpush1.bf16.msra.mxu0 0
        %682 = vmatprep.subr.bf16.mxu0 0
        %683 = vmatpush1.bf16.msra.mxu0 0
        %684 = vmatprep.subr.bf16.mxu0 0
        %685 = vmatpush1.bf16.msra.mxu0 0
        %686 = vmatprep.subr.bf16.mxu0 0
        %687 = vmatpush1.bf16.msra.mxu0 0
        %688 = vmatprep.mubr.bf16.mxu0 0
        %689 = vmatmul.mubr.bf16.gmra.mrb[0].mxu0 %v651
        %v690 = vpop.f32.mrb[0].mxu0
        %v691 = vadd.f32 0.0, %v690
        %v692 = vpop.f32.mrb[0].mxu0
        %v693 = vpop.f32.mrb[0].mxu0
        %v694 = vpop.f32.mrb[0].mxu0
        %695 = vdwg.mxu0
        %v697 = vsel %vm625, %v649, 0
        %v699 = vsel %vm653, %v529, 0
        %701 = vmatprep.subr.bf16.mxu0 0
        %702 = vmatpush1.bf16.msra.mxu0 %v699
        %703 = vmatprep.subr.bf16.mxu0 0
        %704 = vmatpush1.bf16.msra.mxu0 0
        %705 = vmatprep.subr.bf16.mxu0 0
        %706 = vmatpush1.bf16.msra.mxu0 0
        %707 = vmatprep.subr.bf16.mxu0 0
        %708 = vmatpush1.bf16.msra.mxu0 0
        %709 = vmatprep.subr.bf16.mxu0 0
        %710 = vmatpush1.bf16.msra.mxu0 0
        %711 = vmatprep.subr.bf16.mxu0 0
        %712 = vmatpush1.bf16.msra.mxu0 0
        %713 = vmatprep.subr.bf16.mxu0 0
        %714 = vmatpush1.bf16.msra.mxu0 0
        %715 = vmatprep.subr.bf16.mxu0 0
        %716 = vmatpush1.bf16.msra.mxu0 0
        %717 = vmatprep.subr.bf16.mxu0 0
        %718 = vmatpush1.bf16.msra.mxu0 0
        %719 = vmatprep.subr.bf16.mxu0 0
        %720 = vmatpush1.bf16.msra.mxu0 0
        %721 = vmatprep.subr.bf16.mxu0 0
        %722 = vmatpush1.bf16.msra.mxu0 0
        %723 = vmatprep.subr.bf16.mxu0 0
        %724 = vmatpush1.bf16.msra.mxu0 0
        %725 = vmatprep.subr.bf16.mxu0 0
        %726 = vmatpush1.bf16.msra.mxu0 0
        %727 = vmatprep.subr.bf16.mxu0 0
        %728 = vmatpush1.bf16.msra.mxu0 0
        %729 = vmatprep.subr.bf16.mxu0 0
        %730 = vmatpush1.bf16.msra.mxu0 0
        %731 = vmatprep.subr.bf16.mxu0 0
        %732 = vmatpush1.bf16.msra.mxu0 0
        %733 = vmatprep.mubr.bf16.mxu0 0
        %734 = vmatmul.mubr.bf16.gmra.mrb[0].mxu0 %v697
        %v735 = vpop.f32.mrb[0].mxu0
        %v736 = vadd.f32 0.0, %v735
        %v737 = vpop.f32.mrb[0].mxu0
        %v738 = vpop.f32.mrb[0].mxu0
        %v739 = vpop.f32.mrb[0].mxu0
        %740 = vdwg.mxu0
        %v741 = vpack.c.bf16 %v691, %v691
        %v742 = vpack.c.bf16 %v736, %v736
        %v745 = vunpack.c.l.b16 %v306
        %v746 = vunpack.c.l.b16 %v307
        %v747 = vpack.c.b16 %v746, %v745
        %v750 = vsel %vm532, %v741, 0
        %752 = vmatprep.subr.bf16.mxu0 0
        %753 = vmatpush1.bf16.msra.mxu0 %v747
        %754 = vmatprep.subr.bf16.mxu0 0
        %755 = vmatpush1.bf16.msra.mxu0 0
        %756 = vmatprep.subr.bf16.mxu0 0
        %757 = vmatpush1.bf16.msra.mxu0 0
        %758 = vmatprep.subr.bf16.mxu0 0
        %759 = vmatpush1.bf16.msra.mxu0 0
        %760 = vmatprep.subr.bf16.mxu0 0
        %761 = vmatpush1.bf16.msra.mxu0 0
        %762 = vmatprep.subr.bf16.mxu0 0
        %763 = vmatpush1.bf16.msra.mxu0 0
        %764 = vmatprep.subr.bf16.mxu0 0
        %765 = vmatpush1.bf16.msra.mxu0 0
        %766 = vmatprep.subr.bf16.mxu0 0
        %767 = vmatpush1.bf16.msra.mxu0 0
        %768 = vmatprep.subr.bf16.mxu0 0
        %769 = vmatpush1.bf16.msra.mxu0 0
        %770 = vmatprep.subr.bf16.mxu0 0
        %771 = vmatpush1.bf16.msra.mxu0 0
        %772 = vmatprep.subr.bf16.mxu0 0
        %773 = vmatpush1.bf16.msra.mxu0 0
        %774 = vmatprep.subr.bf16.mxu0 0
        %775 = vmatpush1.bf16.msra.mxu0 0
        %776 = vmatprep.subr.bf16.mxu0 0
        %777 = vmatpush1.bf16.msra.mxu0 0
        %778 = vmatprep.subr.bf16.mxu0 0
        %779 = vmatpush1.bf16.msra.mxu0 0
        %780 = vmatprep.subr.bf16.mxu0 0
        %781 = vmatpush1.bf16.msra.mxu0 0
        %782 = vmatprep.subr.bf16.mxu0 0
        %783 = vmatpush1.bf16.msra.mxu0 0
        %784 = vmatprep.mubr.bf16.mxu0 0
        %785 = vmatmul.mubr.bf16.gmra.mrb[0].mxu0 %v750
        %v786 = vpop.f32.mrb[0].mxu0
        %v787 = vadd.f32 0.0, %v786
        %v788 = vpop.f32.mrb[0].mxu0
        %v789 = vpop.f32.mrb[0].mxu0
        %v790 = vpop.f32.mrb[0].mxu0
        %791 = vdwg.mxu0
        %v794 = vunpack.c.l.b16 %v308
        %v795 = vunpack.c.l.b16 %v309
        %v796 = vpack.c.b16 %v795, %v794
        %v799 = vsel %vm532, %v742, 0
        %801 = vmatprep.subr.bf16.mxu0 0
        %802 = vmatpush1.bf16.msra.mxu0 %v796
        %803 = vmatprep.subr.bf16.mxu0 0
        %804 = vmatpush1.bf16.msra.mxu0 0
        %805 = vmatprep.subr.bf16.mxu0 0
        %806 = vmatpush1.bf16.msra.mxu0 0
        %807 = vmatprep.subr.bf16.mxu0 0
        %808 = vmatpush1.bf16.msra.mxu0 0
        %809 = vmatprep.subr.bf16.mxu0 0
        %810 = vmatpush1.bf16.msra.mxu0 0
        %811 = vmatprep.subr.bf16.mxu0 0
        %812 = vmatpush1.bf16.msra.mxu0 0
        %813 = vmatprep.subr.bf16.mxu0 0
        %814 = vmatpush1.bf16.msra.mxu0 0
        %815 = vmatprep.subr.bf16.mxu0 0
        %816 = vmatpush1.bf16.msra.mxu0 0
        %817 = vmatprep.subr.bf16.mxu0 0
        %818 = vmatpush1.bf16.msra.mxu0 0
        %819 = vmatprep.subr.bf16.mxu0 0
        %820 = vmatpush1.bf16.msra.mxu0 0
        %821 = vmatprep.subr.bf16.mxu0 0
        %822 = vmatpush1.bf16.msra.mxu0 0
        %823 = vmatprep.subr.bf16.mxu0 0
        %824 = vmatpush1.bf16.msra.mxu0 0
        %825 = vmatprep.subr.bf16.mxu0 0
        %826 = vmatpush1.bf16.msra.mxu0 0
        %827 = vmatprep.subr.bf16.mxu0 0
        %828 = vmatpush1.bf16.msra.mxu0 0
        %829 = vmatprep.subr.bf16.mxu0 0
        %830 = vmatpush1.bf16.msra.mxu0 0
        %831 = vmatprep.subr.bf16.mxu0 0
        %832 = vmatpush1.bf16.msra.mxu0 0
        %833 = vmatprep.mubr.bf16.mxu0 0
        %834 = vmatmul.mubr.bf16.gmra.mrb[0].mxu0 %v799
        %v835 = vpop.f32.mrb[0].mxu0
        %v836 = vadd.f32 0.0, %v835
        %v837 = vpop.f32.mrb[0].mxu0
        %v838 = vpop.f32.mrb[0].mxu0
        %v839 = vpop.f32.mrb[0].mxu0
        %840 = vdwg.mxu0
        %v841 = vsel %vm325, %v787, 0.0
        %v842 = vsel %vm325, %v836, 0.0
        %v843 = vadd.f32 %v841, %v842
        %v845 = vlaneseq
        %v846 = vshrl.u32 %v845, 7
        %v847 = vsub.s32 0, %v846
        %v848 = vrot.slane %v310, %v847
        %v850 = vadd.f32 %v843, %v848
        %851 = vst.msk [vmem:[%s277] sm:$0xff] %vm325, %v850
        %s852 = sand.u32 %s180, 1
        %s853 = scalar_lea.sflag [#allocation3], %s852
        %s854 = sand.u32 %s180, 1
        %s855 = smul.addr %s854, 8
        %s856 = scalar_lea.vmem [#allocation2], %s855
        // Predicated region
        $region45: #{tpu_custom_call.1} parent=43 // pred_check
          %p857 = pneg %p190
        $region46: #{tpu_custom_call.1} parent=43 // pred_check_branch
          %859 = sbr.rel (%p857) target = $region48
        $region47: #{tpu_custom_call.1} parent=43 // pred_region
          %s861 = ssub.s32 128, 128
          %862 = vsyncadd %s853, %s861
          %s863 = sadd.s32 %s25, %s24
          %s864 = smul.addr %s863, 128
          %s865 = scalar_lea.hbm %s6, %s864
          %s867 = sshll.u32 %s856, 4
          %s868 = int_to_ptr.vmem [resolvable:$true] %s867
          %870 = dma.vmem_to_hbm [thread:$0]  %s868, 128, %s865, %s853
        $region48: #{tpu_custom_call.1} parent=43 // pred_fallthru
          _
      $region44: #{tpu_custom_call.1} parent=5 // pred_fallthru
        _
      %p871 = scmp.le.s32.totalorder 2, %s15
      // Predicated region
      $region49: #{tpu_custom_call.1} parent=5 // pred_check
        %p872 = pneg %p871
      $region50: #{tpu_custom_call.1} parent=5 // pred_check_branch
        %874 = sbr.rel (%p872) target = $region52
      $region51: #{tpu_custom_call.1} parent=5 // pred_region
        %s875 = ssub.s32 %s15, 2
        // Predicated region
        $region53: #{tpu_custom_call.1} parent=51 // pred_check
          %p876 = pneg %p196
        $region54: #{tpu_custom_call.1} parent=51 // pred_check_branch
          %878 = sbr.rel (%p876) target = $region56
        $region55: #{tpu_custom_call.1} parent=51 // pred_region
          %s879 = sand.u32 %s181, 1
          %s880 = scalar_lea.sflag [#allocation3], %s879
          %s881 = sand.u32 %s181, 1
          %s882 = smul.addr %s881, 8
          %s883 = scalar_lea.vmem [#allocation2], %s882
          %884 = dma.done %s880, 128
        $region56: #{tpu_custom_call.1} parent=51 // pred_fallthru
          _
      $region52: #{tpu_custom_call.1} parent=5 // pred_fallthru
        _
    $region6: #{tpu_custom_call.1} parent=1 // loop_footer
      %s19 = sadd.s32 1, %s15
    $region7: #{tpu_custom_call.1} parent=1 // loop_footer_branch
      %14 = sbr.rel target = $region3
    $region8: #{tpu_custom_call.1} parent=1 // loop_exit
      _
    %885 = vsyncpa [#allocation3], 1
    %s886 = scalar_lea.sflag [#allocation3], 1
    %887 = vsyncpa %s886, 1

// kernel: tpu_custom_call.1
$region0: #{tpu_custom_call.1}
  #allocation0 [shape = 'u32[]', space=smem, size = 0x4, offset = 0x4, fixed_abs, tag = 'smem constant byte address 0x4 - core index']
  #allocation1 [shape = 'u32[144,128]{1,0:T(1,128)}', space=vmem, size = 0x12000, scoped, tag = 'internal scratch']
  %s0 = inlined_call_operand.vmem [shape: bf16[2,8,32], index: 0, kind: input, shape index: {}]
  %s1 = inlined_call_operand.vmem [shape: bf16[2,8,32], index: 1, kind: input, shape index: {}]
  %s2 = inlined_call_operand.vmem [shape: bf16[2,32,16], index: 2, kind: input, shape index: {}]
  %s3 = inlined_call_operand.vmem [shape: bf16[2,32,16], index: 3, kind: input, shape index: {}]
  %s4 = inlined_call_operand.vmem [shape: bf16[2,16,32], index: 4, kind: input, shape index: {}]
  %s5 = inlined_call_operand.vmem [shape: f32[1,32], index: 5, kind: input, shape index: {}]
  %s6 = inlined_call_operand.hbm [shape: f32[2,8,32], index: 6, kind: output, shape index: {}]
  %s7 = sld [smem:[#allocation0]]
  $region57: #{tpu_custom_call.1} parent=0
    _
  %s9 = ssub.s32 1, %s7
  %s10 = scalar_select 0, %s9, %s7
  $region1: #{tpu_custom_call.1} parent=0
    #allocation2 [shape = 'u8[8192]{0}', space=vmem, size = 0x2000, scoped, tag = 'output window, operand 0']
    #allocation3 [shape = 's32[2]{0}', space=sflag, size = 0x8, scoped, tag = 'scoped memory for tpu_custom_call.1']
    %11 = vsyncpa [#allocation3], 0
    %s12 = scalar_lea.sflag [#allocation3], 1
    %13 = vsyncpa %s12, 0
    loop: start=0, step=1, limit=4
    $region2: #{tpu_custom_call.1} parent=1 // loop_pre_header
      _
    $region3: #{tpu_custom_call.1} parent=1 // loop_header
      %s15 = sphi 0, %s19
      %p16 = scmp.ge.s32.totalorder %s15, 4
      %s22 = sphi 0, %s34
      %s23 = sphi 0, %s30
      %s24 = sphi 0, %s22
      %s25 = sphi 0, %s23
      %s26 = sphi 0, %s24
      %s27 = sphi 0, %s25
      %s37 = sphi 0, %s39
      %s40 = sphi 0, %s37
      %s41 = sphi 0, %s40
      %s57 = sphi 0, %s41
      %s65 = sphi 0, %s67
      %s68 = sphi 0, %s65
      %s69 = sphi 0, %s68
      %s85 = sphi 0, %s69
      %s89 = sphi 0, %s89
      %s91 = sphi 0, %s89
      %s92 = sphi 0, %s91
      %s106 = sphi 0, %s92
      %s110 = sphi 0, %s110
      %s112 = sphi 0, %s110
      %s113 = sphi 0, %s112
      %s127 = sphi 0, %s113
      %s131 = sphi 0, %s131
      %s133 = sphi 0, %s131
      %s134 = sphi 0, %s133
      %s148 = sphi 0, %s134
      %s152 = sphi 0, %s152
      %s154 = sphi 0, %s152
      %s155 = sphi 0, %s154
      %s169 = sphi 0, %s155
      %s177 = sphi 0, %s179
      %s180 = sphi 0, %s177
      %s181 = sphi 0, %s180
      %s197 = sphi 0, %s181
    $region4: #{tpu_custom_call.1} parent=1 // loop_header_branch
      %18 = sbr.rel (%p16) target = $region8
    $region5: #{tpu_custom_call.1} parent=1 // loop_body
      %s20 = ssub.s32 %s15, 1
      %s21 = ssub.s32 %s15, 2
      %s28 = sadd.s32 1, %s23
      %p29 = scmp.ge.s32.totalorder %s28, 1
      %s30 = scalar_select %p29, 0, %s28
      %s31 = sadd.s32 1, %s22
      %s32 = scalar_select %p29, %s31, %s22
      %p33 = scmp.ge.s32.totalorder %s32, 2
      %s34 = scalar_select %p33, 0, %s32
      %s35 = ssub.s32 %s22, %s34
      %p36 = scmp.eq.s32.totalorder %s35, 0
      %s38 = sadd.s32 %s37, 1
      %s39 = scalar_select %p36, %s37, %s38
      %p42 = pneg %p36
      %p43 = scmp.eq.s32.totalorder %s15, 1
      %p44 = por %p42, %p43
      %p45 = scmp.ne.s32.totalorder %s37, %s40
      %p46 = scmp.eq.s32.totalorder %s15, 0
      %p47 = por %p45, %p46
      %p48 = scmp.ne.s32.totalorder %s37, %s40
      %p49 = scmp.eq.s32.totalorder %s20, 1
      %p50 = por %p48, %p49
      %p51 = scmp.ne.s32.totalorder %s40, %s41
      %p52 = scmp.eq.s32.totalorder %s20, 0
      %p53 = por %p51, %p52
      %p54 = scmp.ne.s32.totalorder %s40, %s41
      %p55 = scmp.eq.s32.totalorder %s21, 1
      %p56 = por %p54, %p55
      %p58 = scmp.ne.s32.totalorder %s41, %s57
      %p59 = scmp.eq.s32.totalorder %s21, 0
      %p60 = por %p58, %p59
      %s61 = ssub.s32 %s22, %s34
      %s62 = ssub.s32 %s23, %s30
      %s63 = sor.u32 %s61, %s62
      %p64 = scmp.eq.s32.totalorder %s63, 0
      %s66 = sadd.s32 %s65, 1
      %s67 = scalar_select %p64, %s65, %s66
      %p70 = pneg %p64
      %p71 = scmp.eq.s32.totalorder %s15, 1
      %p72 = por %p70, %p71
      %p73 = scmp.ne.s32.totalorder %s65, %s68
      %p74 = scmp.eq.s32.totalorder %s15, 0
      %p75 = por %p73, %p74
      %p76 = scmp.ne.s32.totalorder %s65, %s68
      %p77 = scmp.eq.s32.totalorder %s20, 1
      %p78 = por %p76, %p77
      %p79 = scmp.ne.s32.totalorder %s68, %s69
      %p80 = scmp.eq.s32.totalorder %s20, 0
      %p81 = por %p79, %p80
      %p82 = scmp.ne.s32.totalorder %s68, %s69
      %p83 = scmp.eq.s32.totalorder %s21, 1
      %p84 = por %p82, %p83
      %p86 = scmp.ne.s32.totalorder %s69, %s85
      %p87 = scmp.eq.s32.totalorder %s21, 0
      %p88 = por %p86, %p87
      %s90 = sadd.s32 %s89, 1
      %p93 = scmp.eq.s32.totalorder %s15, 1
      %p94 = scmp.ne.s32.totalorder %s89, %s91
      %p95 = scmp.eq.s32.totalorder %s15, 0
      %p96 = por %p94, %p95
      %p97 = scmp.ne.s32.totalorder %s89, %s91
      %p98 = scmp.eq.s32.totalorder %s20, 1
      %p99 = por %p97, %p98
      %p100 = scmp.ne.s32.totalorder %s91, %s92
      %p101 = scmp.eq.s32.totalorder %s20, 0
      %p102 = por %p100, %p101
      %p103 = scmp.ne.s32.totalorder %s91, %s92
      %p104 = scmp.eq.s32.totalorder %s21, 1
      %p105 = por %p103, %p104
      %p107 = scmp.ne.s32.totalorder %s92, %s106
      %p108 = scmp.eq.s32.totalorder %s21, 0
      %p109 = por %p107, %p108
      %s111 = sadd.s32 %s110, 1
      %p114 = scmp.eq.s32.totalorder %s15, 1
      %p115 = scmp.ne.s32.totalorder %s110, %s112
      %p116 = scmp.eq.s32.totalorder %s15, 0
      %p117 = por %p115, %p116
      %p118 = scmp.ne.s32.totalorder %s110, %s112
      %p119 = scmp.eq.s32.totalorder %s20, 1
      %p120 = por %p118, %p119
      %p121 = scmp.ne.s32.totalorder %s112, %s113
      %p122 = scmp.eq.s32.totalorder %s20, 0
      %p123 = por %p121, %p122
      %p124 = scmp.ne.s32.totalorder %s112, %s113
      %p125 = scmp.eq.s32.totalorder %s21, 1
      %p126 = por %p124, %p125
      %p128 = scmp.ne.s32.totalorder %s113, %s127
      %p129 = scmp.eq.s32.totalorder %s21, 0
      %p130 = por %p128, %p129
      %s132 = sadd.s32 %s131, 1
      %p135 = scmp.eq.s32.totalorder %s15, 1
      %p136 = scmp.ne.s32.totalorder %s131, %s133
      %p137 = scmp.eq.s32.totalorder %s15, 0
      %p138 = por %p136, %p137
      %p139 = scmp.ne.s32.totalorder %s131, %s133
      %p140 = scmp.eq.s32.totalorder %s20, 1
      %p141 = por %p139, %p140
      %p142 = scmp.ne.s32.totalorder %s133, %s134
      %p143 = scmp.eq.s32.totalorder %s20, 0
      %p144 = por %p142, %p143
      %p145 = scmp.ne.s32.totalorder %s133, %s134
      %p146 = scmp.eq.s32.totalorder %s21, 1
      %p147 = por %p145, %p146
      %p149 = scmp.ne.s32.totalorder %s134, %s148
      %p150 = scmp.eq.s32.totalorder %s21, 0
      %p151 = por %p149, %p150
      %s153 = sadd.s32 %s152, 1
      %p156 = scmp.eq.s32.totalorder %s15, 1
      %p157 = scmp.ne.s32.totalorder %s152, %s154
      %p158 = scmp.eq.s32.totalorder %s15, 0
      %p159 = por %p157, %p158
      %p160 = scmp.ne.s32.totalorder %s152, %s154
      %p161 = scmp.eq.s32.totalorder %s20, 1
      %p162 = por %p160, %p161
      %p163 = scmp.ne.s32.totalorder %s154, %s155
      %p164 = scmp.eq.s32.totalorder %s20, 0
      %p165 = por %p163, %p164
      %p166 = scmp.ne.s32.totalorder %s154, %s155
      %p167 = scmp.eq.s32.totalorder %s21, 1
      %p168 = por %p166, %p167
      %p170 = scmp.ne.s32.totalorder %s155, %s169
      %p171 = scmp.eq.s32.totalorder %s21, 0
      %p172 = por %p170, %p171
      %s173 = ssub.s32 %s22, %s34
      %s174 = ssub.s32 %s23, %s30
      %s175 = sor.u32 %s173, %s174
      %p176 = scmp.eq.s32.totalorder %s175, 0
      %s178 = sadd.s32 %s177, 1
      %s179 = scalar_select %p176, %s177, %s178
      %p182 = pneg %p176
      %p183 = scmp.eq.s32.totalorder %s15, 1
      %p184 = por %p182, %p183
      %p185 = scmp.ne.s32.totalorder %s177, %s180
      %p186 = scmp.eq.s32.totalorder %s15, 0
      %p187 = por %p185, %p186
      %p188 = scmp.ne.s32.totalorder %s177, %s180
      %p189 = scmp.eq.s32.totalorder %s20, 1
      %p190 = por %p188, %p189
      %p191 = scmp.ne.s32.totalorder %s180, %s181
      %p192 = scmp.eq.s32.totalorder %s20, 0
      %p193 = por %p191, %p192
      %p194 = scmp.ne.s32.totalorder %s180, %s181
      %p195 = scmp.eq.s32.totalorder %s21, 1
      %p196 = por %p194, %p195
      %p198 = scmp.ne.s32.totalorder %s181, %s197
      %p199 = scmp.eq.s32.totalorder %s21, 0
      %p200 = por %p198, %p199
      %p201 = scmp.le.s32.totalorder 1, %s15
      %p202 = scmp.lt.s32.totalorder %s15, 3
      %p203 = pnand %p201, %p202
      %p204 = pneg %p203
      // Predicated region
      $region9: #{tpu_custom_call.1} parent=5 // pred_check
        _
      $region10: #{tpu_custom_call.1} parent=5 // pred_check_branch
        %206 = sbr.rel (%p203) target = $region12
      $region11: #{tpu_custom_call.1} parent=5 // pred_region
        %s207 = ssub.s32 %s15, 1
        // Predicated region
        $region13: #{tpu_custom_call.1} parent=11 // pred_check
          %p208 = pneg %p102
        $region14: #{tpu_custom_call.1} parent=11 // pred_check_branch
          %210 = sbr.rel (%p208) target = $region16
        $region15: #{tpu_custom_call.1} parent=11 // pred_region
          _
        $region16: #{tpu_custom_call.1} parent=11 // pred_fallthru
          _
        // Predicated region
        $region17: #{tpu_custom_call.1} parent=11 // pred_check
          %p211 = pneg %p123
        $region18: #{tpu_custom_call.1} parent=11 // pred_check_branch
          %213 = sbr.rel (%p211) target = $region20
        $region19: #{tpu_custom_call.1} parent=11 // pred_region
          _
        $region20: #{tpu_custom_call.1} parent=11 // pred_fallthru
          _
        // Predicated region
        $region21: #{tpu_custom_call.1} parent=11 // pred_check
          %p214 = pneg %p144
        $region22: #{tpu_custom_call.1} parent=11 // pred_check_branch
          %216 = sbr.rel (%p214) target = $region24
        $region23: #{tpu_custom_call.1} parent=11 // pred_region
          _
        $region24: #{tpu_custom_call.1} parent=11 // pred_fallthru
          _
        // Predicated region
        $region25: #{tpu_custom_call.1} parent=11 // pred_check
          %p217 = pneg %p165
        $region26: #{tpu_custom_call.1} parent=11 // pred_check_branch
          %219 = sbr.rel (%p217) target = $region28
        $region27: #{tpu_custom_call.1} parent=11 // pred_region
          _
        $region28: #{tpu_custom_call.1} parent=11 // pred_fallthru
          _
      $region12: #{tpu_custom_call.1} parent=5 // pred_fallthru
        _
      %p220 = scmp.lt.s32.totalorder %s15, 2
      // Predicated region
      $region29: #{tpu_custom_call.1} parent=5 // pred_check
        %p221 = pneg %p220
      $region30: #{tpu_custom_call.1} parent=5 // pred_check_branch
        %223 = sbr.rel (%p221) target = $region32
      $region31: #{tpu_custom_call.1} parent=5 // pred_region
        // Predicated region
        $region33: #{tpu_custom_call.1} parent=31 // pred_check
          %p224 = pneg %p47
        $region34: #{tpu_custom_call.1} parent=31 // pred_check_branch
          %226 = sbr.rel (%p224) target = $region36
        $region35: #{tpu_custom_call.1} parent=31 // pred_region
          %p227 = scmp.lt.s32.totalorder %s22, 1
          %s228 = scalar_select %p227, %s22, 1
          %s229 = smul.addr %s228, 4
          %s230 = scalar_lea.vmem %s0, %s229
        $region36: #{tpu_custom_call.1} parent=31 // pred_fallthru
          _
        // Predicated region
        $region37: #{tpu_custom_call.1} parent=31 // pred_check
          %p231 = pneg %p75
        $region38: #{tpu_custom_call.1} parent=31 // pred_check_branch
          %233 = sbr.rel (%p231) target = $region40
        $region39: #{tpu_custom_call.1} parent=31 // pred_region
          %p234 = scmp.lt.s32.totalorder %s22, 1
          %s235 = scalar_select %p234, %s22, 1
          %p236 = scmp.lt.s32.totalorder %s23, 0
          %s237 = scalar_select %p236, %s23, 0
          %s238 = sadd.s32 %s237, %s235
          %s239 = smul.addr %s238, 4
          %s240 = scalar_lea.vmem %s1, %s239
        $region40: #{tpu_custom_call.1} parent=31 // pred_fallthru
          _
      $region32: #{tpu_custom_call.1} parent=5 // pred_fallthru
        _
      %p241 = scmp.le.s32.totalorder 1, %s15
      %p242 = scmp.lt.s32.totalorder %s15, 3
      %p243 = pnand %p241, %p242
      %p244 = pneg %p243
      // Predicated region
      $region41: #{tpu_custom_call.1} parent=5 // pred_check
        _
      $region42: #{tpu_custom_call.1} parent=5 // pred_check_branch
        %246 = sbr.rel (%p243) target = $region44
      $region43: #{tpu_custom_call.1} parent=5 // pred_region
        %s247 = ssub.s32 %s15, 1
        %p248 = scmp.lt.s32.totalorder %s24, 1
        %s249 = scalar_select %p248, %s24, 1
        %s250 = smul.addr %s249, 4
        %s251 = scalar_lea.vmem %s0, %s250
        %p252 = pneg %p53
        %p253 = pneg %p50
        %p254 = scmp.lt.s32.totalorder %s24, 1
        %s255 = scalar_select %p254, %s24, 1
        %p256 = scmp.lt.s32.totalorder %s25, 0
        %s257 = scalar_select %p256, %s25, 0
        %s258 = sadd.s32 %s257, %s255
        %s259 = smul.addr %s258, 4
        %s260 = scalar_lea.vmem %s1, %s259
        %p261 = pneg %p81
        %p262 = pneg %p78
        %p263 = pneg %p102
        %p264 = pneg %p99
        %p265 = pneg %p123
        %p266 = pneg %p120
        %p267 = pneg %p144
        %p268 = pneg %p141
        %p269 = pneg %p165
        %p270 = pneg %p162
        %p271 = pneg %p193
        %p272 = pneg %p190
        %s273 = sand.u32 %s180, 1
        %s274 = scalar_lea.sflag [#allocation3], %s273
        %s275 = sand.u32 %s180, 1
        %s276 = smul.addr %s275, 8
        %s277 = scalar_lea.vmem [#allocation2], %s276
        %p278 = scmp.lt.s32.totalorder %s24, 1
        %s279 = scalar_select %p278, %s24, 1
        %s280 = smul.addr %s279, 4
        %s281 = scalar_lea.vmem %s0, %s280
        %p282 = scmp.lt.s32.totalorder %s24, 1
        %s283 = scalar_select %p282, %s24, 1
        %p284 = scmp.lt.s32.totalorder %s25, 0
        %s285 = scalar_select %p284, %s25, 0
        %s286 = sadd.s32 %s285, %s283
        %s287 = smul.addr %s286, 4
        %s288 = scalar_lea.vmem %s1, %s287
        %v290 = vld [vmem:[%s2] sm:$0xf]
        %v291 = vld [vmem:[%s2 + $0x4] sm:$0xf]
        %v292 = vld [vmem:[%s2 + $0x8] sm:$0xf]
        %v293 = vld [vmem:[%s2 + $0xc] sm:$0xf]
        %v294 = vld [vmem:[%s2 + $0x10] sm:$0xf]
        %v295 = vld [vmem:[%s2 + $0x14] sm:$0xf]
        %v296 = vld [vmem:[%s2 + $0x18] sm:$0xf]
        %v297 = vld [vmem:[%s2 + $0x1c] sm:$0xf]
        %v298 = vld [vmem:[%s3] sm:$0xf]
        %v299 = vld [vmem:[%s3 + $0x4] sm:$0xf]
        %v300 = vld [vmem:[%s3 + $0x8] sm:$0xf]
        %v301 = vld [vmem:[%s3 + $0xc] sm:$0xf]
        %v302 = vld [vmem:[%s3 + $0x10] sm:$0xf]
        %v303 = vld [vmem:[%s3 + $0x14] sm:$0xf]
        %v304 = vld [vmem:[%s3 + $0x18] sm:$0xf]
        %v305 = vld [vmem:[%s3 + $0x1c] sm:$0xf]
        %v306 = vld [vmem:[%s4] sm:$0xf]
        %v307 = vld [vmem:[%s4 + $0x4] sm:$0xf]
        %v308 = vld [vmem:[%s4 + $0x8] sm:$0xf]
        %v309 = vld [vmem:[%s4 + $0xc] sm:$0xf]
        %v310 = vld [vmem:[%s5] sm:$0x1]
        %v311 = vld [vmem:[%s281] sm:$0xf]
        %v312 = vld [vmem:[%s288] sm:$0xf]
        %v317 = vunpack.c.l.b16 %v290
        %v318 = vunpack.c.l.b16 %v291
        %v319 = vunpack.c.l.b16 %v292
        %v320 = vunpack.c.l.b16 %v293
        %v321 = vpack.c.b16 %v318, %v317
        %v322 = vpack.c.b16 %v320, %v319
        %vm325 = vcmask 261120
        %v327 = vsel %vm325, %v311, 0
        %329 = vmatprep.subr.bf16.mxu0 0
        %330 = vmatpush1.bf16.msra.mxu0 %v321
        %331 = vmatprep.subr.bf16.mxu0 0
        %332 = vmatpush1.bf16.msra.mxu0 %v322
        %333 = vmatprep.subr.bf16.mxu0 0
        %334 = vmatpush1.bf16.msra.mxu0 0
        %335 = vmatprep.subr.bf16.mxu0 0
        %336 = vmatpush1.bf16.msra.mxu0 0
        %337 = vmatprep.subr.bf16.mxu0 0
        %338 = vmatpush1.bf16.msra.mxu0 0
        %339 = vmatprep.subr.bf16.mxu0 0
        %340 = vmatpush1.bf16.msra.mxu0 0
        %341 = vmatprep.subr.bf16.mxu0 0
        %342 = vmatpush1.bf16.msra.mxu0 0
        %343 = vmatprep.subr.bf16.mxu0 0
        %344 = vmatpush1.bf16.msra.mxu0 0
        %345 = vmatprep.subr.bf16.mxu0 0
        %346 = vmatpush1.bf16.msra.mxu0 0
        %347 = vmatprep.subr.bf16.mxu0 0
        %348 = vmatpush1.bf16.msra.mxu0 0
        %349 = vmatprep.subr.bf16.mxu0 0
        %350 = vmatpush1.bf16.msra.mxu0 0
        %351 = vmatprep.subr.bf16.mxu0 0
        %352 = vmatpush1.bf16.msra.mxu0 0
        %353 = vmatprep.subr.bf16.mxu0 0
        %354 = vmatpush1.bf16.msra.mxu0 0
        %355 = vmatprep.subr.bf16.mxu0 0
        %356 = vmatpush1.bf16.msra.mxu0 0
        %357 = vmatprep.subr.bf16.mxu0 0
        %358 = vmatpush1.bf16.msra.mxu0 0
        %359 = vmatprep.subr.bf16.mxu0 0
        %360 = vmatpush1.bf16.msra.mxu0 0
        %361 = vmatprep.mubr.bf16.mxu0 0
        %362 = vmatmul.mubr.bf16.gmra.mrb[0].mxu0 %v327
        %v363 = vpop.f32.mrb[0].mxu0
        %v364 = vadd.f32 0.0, %v363
        %v365 = vpop.f32.mrb[0].mxu0
        %v366 = vpop.f32.mrb[0].mxu0
        %v367 = vpop.f32.mrb[0].mxu0
        %368 = vdwg.mxu0
        %v373 = vunpack.c.l.b16 %v294
        %v374 = vunpack.c.l.b16 %v295
        %v375 = vunpack.c.l.b16 %v296
        %v376 = vunpack.c.l.b16 %v297
        %v377 = vpack.c.b16 %v374, %v373
        %v378 = vpack.c.b16 %v376, %v375
        %381 = vmatprep.subr.bf16.mxu0 0
        %382 = vmatpush1.bf16.msra.mxu0 %v377
        %383 = vmatprep.subr.bf16.mxu0 0
        %384 = vmatpush1.bf16.msra.mxu0 %v378
        %385 = vmatprep.subr.bf16.mxu0 0
        %386 = vmatpush1.bf16.msra.mxu0 0
        %387 = vmatprep.subr.bf16.mxu0 0
        %388 = vmatpush1.bf16.msra.mxu0 0
        %389 = vmatprep.subr.bf16.mxu0 0
        %390 = vmatpush1.bf16.msra.mxu0 0
        %391 = vmatprep.subr.bf16.mxu0 0
        %392 = vmatpush1.bf16.msra.mxu0 0
        %393 = vmatprep.subr.bf16.mxu0 0
        %394 = vmatpush1.bf16.msra.mxu0 0
        %395 = vmatprep.subr.bf16.mxu0 0
        %396 = vmatpush1.bf16.msra.mxu0 0
        %397 = vmatprep.subr.bf16.mxu0 0
        %398 = vmatpush1.bf16.msra.mxu0 0
        %399 = vmatprep.subr.bf16.mxu0 0
        %400 = vmatpush1.bf16.msra.mxu0 0
        %401 = vmatprep.subr.bf16.mxu0 0
        %402 = vmatpush1.bf16.msra.mxu0 0
        %403 = vmatprep.subr.bf16.mxu0 0
        %404 = vmatpush1.bf16.msra.mxu0 0
        %405 = vmatprep.subr.bf16.mxu0 0
        %406 = vmatpush1.bf16.msra.mxu0 0
        %407 = vmatprep.subr.bf16.mxu0 0
        %408 = vmatpush1.bf16.msra.mxu0 0
        %409 = vmatprep.subr.bf16.mxu0 0
        %410 = vmatpush1.bf16.msra.mxu0 0
        %411 = vmatprep.subr.bf16.mxu0 0
        %412 = vmatpush1.bf16.msra.mxu0 0
        %413 = vmatprep.mubr.bf16.mxu0 0
        %414 = vmatmul.mubr.bf16.gmra.mrb[0].mxu0 %v327
        %v415 = vpop.f32.mrb[0].mxu0
        %v416 = vadd.f32 0.0, %v415
        %v417 = vpop.f32.mrb[0].mxu0
        %v418 = vpop.f32.mrb[0].mxu0
        %v419 = vpop.f32.mrb[0].mxu0
        %420 = vdwg.mxu0
        %v425 = vunpack.c.l.b16 %v298
        %v426 = vunpack.c.l.b16 %v299
        %v427 = vunpack.c.l.b16 %v300
        %v428 = vunpack.c.l.b16 %v301
        %v429 = vpack.c.b16 %v426, %v425
        %v430 = vpack.c.b16 %v428, %v427
        %v434 = vsel %vm325, %v312, 0
        %436 = vmatprep.subr.bf16.mxu0 0
        %437 = vmatpush1.bf16.msra.mxu0 %v429
        %438 = vmatprep.subr.bf16.mxu0 0
        %439 = vmatpush1.bf16.msra.mxu0 %v430
        %440 = vmatprep.subr.bf16.mxu0 0
        %441 = vmatpush1.bf16.msra.mxu0 0
        %442 = vmatprep.subr.bf16.mxu0 0
        %443 = vmatpush1.bf16.msra.mxu0 0
        %444 = vmatprep.subr.bf16.mxu0 0
        %445 = vmatpush1.bf16.msra.mxu0 0
        %446 = vmatprep.subr.bf16.mxu0 0
        %447 = vmatpush1.bf16.msra.mxu0 0
        %448 = vmatprep.subr.bf16.mxu0 0
        %449 = vmatpush1.bf16.msra.mxu0 0
        %450 = vmatprep.subr.bf16.mxu0 0
        %451 = vmatpush1.bf16.msra.mxu0 0
        %452 = vmatprep.subr.bf16.mxu0 0
        %453 = vmatpush1.bf16.msra.mxu0 0
        %454 = vmatprep.subr.bf16.mxu0 0
        %455 = vmatpush1.bf16.msra.mxu0 0
        %456 = vmatprep.subr.bf16.mxu0 0
        %457 = vmatpush1.bf16.msra.mxu0 0
        %458 = vmatprep.subr.bf16.mxu0 0
        %459 = vmatpush1.bf16.msra.mxu0 0
        %460 = vmatprep.subr.bf16.mxu0 0
        %461 = vmatpush1.bf16.msra.mxu0 0
        %462 = vmatprep.subr.bf16.mxu0 0
        %463 = vmatpush1.bf16.msra.mxu0 0
        %464 = vmatprep.subr.bf16.mxu0 0
        %465 = vmatpush1.bf16.msra.mxu0 0
        %466 = vmatprep.subr.bf16.mxu0 0
        %467 = vmatpush1.bf16.msra.mxu0 0
        %468 = vmatprep.mubr.bf16.mxu0 0
        %469 = vmatmul.mubr.bf16.gmra.mrb[0].mxu0 %v434
        %v470 = vpop.f32.mrb[0].mxu0
        %v471 = vadd.f32 0.0, %v470
        %v472 = vpop.f32.mrb[0].mxu0
        %v473 = vpop.f32.mrb[0].mxu0
        %v474 = vpop.f32.mrb[0].mxu0
        %475 = vdwg.mxu0
        %v480 = vunpack.c.l.b16 %v302
        %v481 = vunpack.c.l.b16 %v303
        %v482 = vunpack.c.l.b16 %v304
        %v483 = vunpack.c.l.b16 %v305
        %v484 = vpack.c.b16 %v481, %v480
        %v485 = vpack.c.b16 %v483, %v482
        %488 = vmatprep.subr.bf16.mxu0 0
        %489 = vmatpush1.bf16.msra.mxu0 %v484
        %490 = vmatprep.subr.bf16.mxu0 0
        %491 = vmatpush1.bf16.msra.mxu0 %v485
        %492 = vmatprep.subr.bf16.mxu0 0
        %493 = vmatpush1.bf16.msra.mxu0 0
        %494 = vmatprep.subr.bf16.mxu0 0
        %495 = vmatpush1.bf16.msra.mxu0 0
        %496 = vmatprep.subr.bf16.mxu0 0
        %497 = vmatpush1.bf16.msra.mxu0 0
        %498 = vmatprep.subr.bf16.mxu0 0
        %499 = vmatpush1.bf16.msra.mxu0 0
        %500 = vmatprep.subr.bf16.mxu0 0
        %501 = vmatpush1.bf16.msra.mxu0 0
        %502 = vmatprep.subr.bf16.mxu0 0
        %503 = vmatpush1.bf16.msra.mxu0 0
        %504 = vmatprep.subr.bf16.mxu0 0
        %505 = vmatpush1.bf16.msra.mxu0 0
        %506 = vmatprep.subr.bf16.mxu0 0
        %507 = vmatpush1.bf16.msra.mxu0 0
        %508 = vmatprep.subr.bf16.mxu0 0
        %509 = vmatpush1.bf16.msra.mxu0 0
        %510 = vmatprep.subr.bf16.mxu0 0
        %511 = vmatpush1.bf16.msra.mxu0 0
        %512 = vmatprep.subr.bf16.mxu0 0
        %513 = vmatpush1.bf16.msra.mxu0 0
        %514 = vmatprep.subr.bf16.mxu0 0
        %515 = vmatpush1.bf16.msra.mxu0 0
        %516 = vmatprep.subr.bf16.mxu0 0
        %517 = vmatpush1.bf16.msra.mxu0 0
        %518 = vmatprep.subr.bf16.mxu0 0
        %519 = vmatpush1.bf16.msra.mxu0 0
        %520 = vmatprep.mubr.bf16.mxu0 0
        %521 = vmatmul.mubr.bf16.gmra.mrb[0].mxu0 %v434
        %v522 = vpop.f32.mrb[0].mxu0
        %v523 = vadd.f32 0.0, %v522
        %v524 = vpop.f32.mrb[0].mxu0
        %v525 = vpop.f32.mrb[0].mxu0
        %v526 = vpop.f32.mrb[0].mxu0
        %527 = vdwg.mxu0
        %v528 = vpack.c.bf16 %v364, %v364
        %v529 = vpack.c.bf16 %v416, %v416
        %v530 = vpack.c.bf16 %v471, %v471
        %v531 = vpack.c.bf16 %v523, %v523
        %vm532 = vcmask 130048
        %v534 = vsel %vm532, %v530, 0
        %v537 = vsel %vm532, %v528, 0
        %539 = vmatprep.subr.bf16.mxu0 0
        %540 = vmatpush1.bf16.xpose.msra.mxu0 %v537
        %541 = vmatprep.subr.bf16.mxu0 0
        %542 = vmatpush1.bf16.xpose.msra.mxu0 0
        %543 = vmatprep.subr.bf16.mxu0 0
        %544 = vmatpush1.bf16.xpose.msra.mxu0 0
        %545 = vmatprep.subr.bf16.mxu0 0
        %546 = vmatpush1.bf16.xpose.msra.mxu0 0
        %547 = vmatprep.subr.bf16.mxu0 0
        %548 = vmatpush1.bf16.xpose.msra.mxu0 0
        %549 = vmatprep.subr.bf16.mxu0 0
        %550 = vmatpush1.bf16.xpose.msra.mxu0 0
        %551 = vmatprep.subr.bf16.mxu0 0
        %552 = vmatpush1.bf16.xpose.msra.mxu0 0
        %553 = vmatprep.subr.bf16.mxu0 0
        %554 = vmatpush1.bf16.xpose.msra.mxu0 0
        %555 = vmatprep.subr.bf16.mxu0 0
        %556 = vmatpush1.bf16.xpose.msra.mxu0 0
        %557 = vmatprep.subr.bf16.mxu0 0
        %558 = vmatpush1.bf16.xpose.msra.mxu0 0
        %559 = vmatprep.subr.bf16.mxu0 0
        %560 = vmatpush1.bf16.xpose.msra.mxu0 0
        %561 = vmatprep.subr.bf16.mxu0 0
        %562 = vmatpush1.bf16.xpose.msra.mxu0 0
        %563 = vmatprep.subr.bf16.mxu0 0
        %564 = vmatpush1.bf16.xpose.msra.mxu0 0
        %565 = vmatprep.subr.bf16.mxu0 0
        %566 = vmatpush1.bf16.xpose.msra.mxu0 0
        %567 = vmatprep.subr.bf16.mxu0 0
        %568 = vmatpush1.bf16.xpose.msra.mxu0 0
        %569 = vmatprep.subr.bf16.mxu0 0
        %570 = vmatpush1.bf16.xpose.msra.mxu0 0
        %571 = vmatprep.mubr.bf16.mxu0 0
        %572 = vmatmul.mubr.bf16.gmra.mrb[0].mxu0 %v534
        %v573 = vpop.f32.mrb[0].mxu0
        %v574 = vadd.f32 0.0, %v573
        %v575 = vpop.f32.mrb[0].mxu0
        %v576 = vpop.f32.mrb[0].mxu0
        %v577 = vpop.f32.mrb[0].mxu0
        %578 = vdwg.mxu0
        %v580 = vsel %vm532, %v531, 0
        %v583 = vsel %vm532, %v529, 0
        %585 = vmatprep.subr.bf16.mxu0 0
        %586 = vmatpush1.bf16.xpose.msra.mxu0 %v583
        %587 = vmatprep.subr.bf16.mxu0 0
        %588 = vmatpush1.bf16.xpose.msra.mxu0 0
        %589 = vmatprep.subr.bf16.mxu0 0
        %590 = vmatpush1.bf16.xpose.msra.mxu0 0
        %591 = vmatprep.subr.bf16.mxu0 0
        %592 = vmatpush1.bf16.xpose.msra.mxu0 0
        %593 = vmatprep.subr.bf16.mxu0 0
        %594 = vmatpush1.bf16.xpose.msra.mxu0 0
        %595 = vmatprep.subr.bf16.mxu0 0
        %596 = vmatpush1.bf16.xpose.msra.mxu0 0
        %597 = vmatprep.subr.bf16.mxu0 0
        %598 = vmatpush1.bf16.xpose.msra.mxu0 0
        %599 = vmatprep.subr.bf16.mxu0 0
        %600 = vmatpush1.bf16.xpose.msra.mxu0 0
        %601 = vmatprep.subr.bf16.mxu0 0
        %602 = vmatpush1.bf16.xpose.msra.mxu0 0
        %603 = vmatprep.subr.bf16.mxu0 0
        %604 = vmatpush1.bf16.xpose.msra.mxu0 0
        %605 = vmatprep.subr.bf16.mxu0 0
        %606 = vmatpush1.bf16.xpose.msra.mxu0 0
        %607 = vmatprep.subr.bf16.mxu0 0
        %608 = vmatpush1.bf16.xpose.msra.mxu0 0
        %609 = vmatprep.subr.bf16.mxu0 0
        %610 = vmatpush1.bf16.xpose.msra.mxu0 0
        %611 = vmatprep.subr.bf16.mxu0 0
        %612 = vmatpush1.bf16.xpose.msra.mxu0 0
        %613 = vmatprep.subr.bf16.mxu0 0
        %614 = vmatpush1.bf16.xpose.msra.mxu0 0
        %615 = vmatprep.subr.bf16.mxu0 0
        %616 = vmatpush1.bf16.xpose.msra.mxu0 0
        %617 = vmatprep.mubr.bf16.mxu0 0
        %618 = vmatmul.mubr.bf16.gmra.mrb[0].mxu0 %v580
        %v619 = vpop.f32.mrb[0].mxu0
        %v620 = vadd.f32 0.0, %v619
        %v621 = vpop.f32.mrb[0].mxu0
        %v622 = vpop.f32.mrb[0].mxu0
        %v623 = vpop.f32.mrb[0].mxu0
        %624 = vdwg.mxu0
        %vm625 = vcmask 64512
        %v626 = vsel %vm625, %v574, -inf
        %627 = vmax.xlane.f32.xlu0 %v626
        %v628 = vpop.xlane.xlu0 %627
        %v629 = vsel %vm625, %v620, -inf
        %630 = vmax.xlane.f32.xlu0 %v629
        %v631 = vpop.xlane.xlu0 %630
        %v632 = vsub.f32 %v574, %v628
        %v633 = vsub.f32 %v620, %v631
        %v634 = vmul.f32 %v632, 1.442695
        %v635 = vpow.pop %v634
        %v636 = vmul.f32 %v633, 1.442695
        %v637 = vpow.pop %v636
        %v638 = vsel %vm625, %v635, 0.0
        %639 = vadd.xlane.f32.xlu0 %v638
        %v640 = vpop.xlane.xlu0 %639
        %v641 = vsel %vm625, %v637, 0.0
        %642 = vadd.xlane.f32.xlu0 %v641
        %v643 = vpop.xlane.xlu0 %642
        %v644 = vrcp.pop %v640
        %v645 = vrcp.pop %v643
        %v646 = vmul.f32 %v635, %v644
        %v647 = vmul.f32 %v637, %v645
        %v648 = vpack.c.bf16 %v646, %v646
        %v649 = vpack.c.bf16 %v647, %v647
        %v651 = vsel %vm625, %v648, 0
        %vm653 = vcmask 1043456
        %v654 = vsel %vm653, %v528, 0
        %656 = vmatprep.subr.bf16.mxu0 0
        %657 = vmatpush1.bf16.msra.mxu0 %v654
        %658 = vmatprep.subr.bf16.mxu0 0
        %659 = vmatpush1.bf16.msra.mxu0 0
        %660 = vmatprep.subr.bf16.mxu0 0
        %661 = vmatpush1.bf16.msra.mxu0 0
        %662 = vmatprep.subr.bf16.mxu0 0
        %663 = vmatpush1.bf16.msra.mxu0 0
        %664 = vmatprep.subr.bf16.mxu0 0
        %665 = vmatpush1.bf16.msra.mxu0 0
        %666 = vmatprep.subr.bf16.mxu0 0
        %667 = vmatpush1.bf16.msra.mxu0 0
        %668 = vmatprep.subr.bf16.mxu0 0
        %669 = vmatpush1.bf16.msra.mxu0 0
        %670 = vmatprep.subr.bf16.mxu0 0
        %671 = vmatpush1.bf16.msra.mxu0 0
        %672 = vmatprep.subr.bf16.mxu0 0
        %673 = vmatpush1.bf16.msra.mxu0 0
        %674 = vmatprep.subr.bf16.mxu0 0
        %675 = vmatpush1.bf16.msra.mxu0 0
        %676 = vmatprep.subr.bf16.mxu0 0
        %677 = vmatpush1.bf16.msra.mxu0 0
        %678 = vmatprep.subr.bf16.mxu0 0
        %679 = vmatpush1.bf16.msra.mxu0 0
        %680 = vmatprep.subr.bf16.mxu0 0
        %681 = vmatpush1.bf16.msra.mxu0 0
        %682 = vmatprep.subr.bf16.mxu0 0
        %683 = vmatpush1.bf16.msra.mxu0 0
        %684 = vmatprep.subr.bf16.mxu0 0
        %685 = vmatpush1.bf16.msra.mxu0 0
        %686 = vmatprep.subr.bf16.mxu0 0
        %687 = vmatpush1.bf16.msra.mxu0 0
        %688 = vmatprep.mubr.bf16.mxu0 0
        %689 = vmatmul.mubr.bf16.gmra.mrb[0].mxu0 %v651
        %v690 = vpop.f32.mrb[0].mxu0
        %v691 = vadd.f32 0.0, %v690
        %v692 = vpop.f32.mrb[0].mxu0
        %v693 = vpop.f32.mrb[0].mxu0
        %v694 = vpop.f32.mrb[0].mxu0
        %695 = vdwg.mxu0
        %v697 = vsel %vm625, %v649, 0
        %v699 = vsel %vm653, %v529, 0
        %701 = vmatprep.subr.bf16.mxu0 0
        %702 = vmatpush1.bf16.msra.mxu0 %v699
        %703 = vmatprep.subr.bf16.mxu0 0
        %704 = vmatpush1.bf16.msra.mxu0 0
        %705 = vmatprep.subr.bf16.mxu0 0
        %706 = vmatpush1.bf16.msra.mxu0 0
        %707 = vmatprep.subr.bf16.mxu0 0
        %708 = vmatpush1.bf16.msra.mxu0 0
        %709 = vmatprep.subr.bf16.mxu0 0
        %710 = vmatpush1.bf16.msra.mxu0 0
        %711 = vmatprep.subr.bf16.mxu0 0
        %712 = vmatpush1.bf16.msra.mxu0 0
        %713 = vmatprep.subr.bf16.mxu0 0
        %714 = vmatpush1.bf16.msra.mxu0 0
        %715 = vmatprep.subr.bf16.mxu0 0
        %716 = vmatpush1.bf16.msra.mxu0 0
        %717 = vmatprep.subr.bf16.mxu0 0
        %718 = vmatpush1.bf16.msra.mxu0 0
        %719 = vmatprep.subr.bf16.mxu0 0
        %720 = vmatpush1.bf16.msra.mxu0 0
        %721 = vmatprep.subr.bf16.mxu0 0
        %722 = vmatpush1.bf16.msra.mxu0 0
        %723 = vmatprep.subr.bf16.mxu0 0
        %724 = vmatpush1.bf16.msra.mxu0 0
        %725 = vmatprep.subr.bf16.mxu0 0
        %726 = vmatpush1.bf16.msra.mxu0 0
        %727 = vmatprep.subr.bf16.mxu0 0
        %728 = vmatpush1.bf16.msra.mxu0 0
        %729 = vmatprep.subr.bf16.mxu0 0
        %730 = vmatpush1.bf16.msra.mxu0 0
        %731 = vmatprep.subr.bf16.mxu0 0
        %732 = vmatpush1.bf16.msra.mxu0 0
        %733 = vmatprep.mubr.bf16.mxu0 0
        %734 = vmatmul.mubr.bf16.gmra.mrb[0].mxu0 %v697
        %v735 = vpop.f32.mrb[0].mxu0
        %v736 = vadd.f32 0.0, %v735
        %v737 = vpop.f32.mrb[0].mxu0
        %v738 = vpop.f32.mrb[0].mxu0
        %v739 = vpop.f32.mrb[0].mxu0
        %740 = vdwg.mxu0
        %v741 = vpack.c.bf16 %v691, %v691
        %v742 = vpack.c.bf16 %v736, %v736
        %v745 = vunpack.c.l.b16 %v306
        %v746 = vunpack.c.l.b16 %v307
        %v747 = vpack.c.b16 %v746, %v745
        %v750 = vsel %vm532, %v741, 0
        %752 = vmatprep.subr.bf16.mxu0 0
        %753 = vmatpush1.bf16.msra.mxu0 %v747
        %754 = vmatprep.subr.bf16.mxu0 0
        %755 = vmatpush1.bf16.msra.mxu0 0
        %756 = vmatprep.subr.bf16.mxu0 0
        %757 = vmatpush1.bf16.msra.mxu0 0
        %758 = vmatprep.subr.bf16.mxu0 0
        %759 = vmatpush1.bf16.msra.mxu0 0
        %760 = vmatprep.subr.bf16.mxu0 0
        %761 = vmatpush1.bf16.msra.mxu0 0
        %762 = vmatprep.subr.bf16.mxu0 0
        %763 = vmatpush1.bf16.msra.mxu0 0
        %764 = vmatprep.subr.bf16.mxu0 0
        %765 = vmatpush1.bf16.msra.mxu0 0
        %766 = vmatprep.subr.bf16.mxu0 0
        %767 = vmatpush1.bf16.msra.mxu0 0
        %768 = vmatprep.subr.bf16.mxu0 0
        %769 = vmatpush1.bf16.msra.mxu0 0
        %770 = vmatprep.subr.bf16.mxu0 0
        %771 = vmatpush1.bf16.msra.mxu0 0
        %772 = vmatprep.subr.bf16.mxu0 0
        %773 = vmatpush1.bf16.msra.mxu0 0
        %774 = vmatprep.subr.bf16.mxu0 0
        %775 = vmatpush1.bf16.msra.mxu0 0
        %776 = vmatprep.subr.bf16.mxu0 0
        %777 = vmatpush1.bf16.msra.mxu0 0
        %778 = vmatprep.subr.bf16.mxu0 0
        %779 = vmatpush1.bf16.msra.mxu0 0
        %780 = vmatprep.subr.bf16.mxu0 0
        %781 = vmatpush1.bf16.msra.mxu0 0
        %782 = vmatprep.subr.bf16.mxu0 0
        %783 = vmatpush1.bf16.msra.mxu0 0
        %784 = vmatprep.mubr.bf16.mxu0 0
        %785 = vmatmul.mubr.bf16.gmra.mrb[0].mxu0 %v750
        %v786 = vpop.f32.mrb[0].mxu0
        %v787 = vadd.f32 0.0, %v786
        %v788 = vpop.f32.mrb[0].mxu0
        %v789 = vpop.f32.mrb[0].mxu0
        %v790 = vpop.f32.mrb[0].mxu0
        %791 = vdwg.mxu0
        %v794 = vunpack.c.l.b16 %v308
        %v795 = vunpack.c.l.b16 %v309
        %v796 = vpack.c.b16 %v795, %v794
        %v799 = vsel %vm532, %v742, 0
        %801 = vmatprep.subr.bf16.mxu0 0
        %802 = vmatpush1.bf16.msra.mxu0 %v796
        %803 = vmatprep.subr.bf16.mxu0 0
        %804 = vmatpush1.bf16.msra.mxu0 0
        %805 = vmatprep.subr.bf16.mxu0 0
        %806 = vmatpush1.bf16.msra.mxu0 0
        %807 = vmatprep.subr.bf16.mxu0 0
        %808 = vmatpush1.bf16.msra.mxu0 0
        %809 = vmatprep.subr.bf16.mxu0 0
        %810 = vmatpush1.bf16.msra.mxu0 0
        %811 = vmatprep.subr.bf16.mxu0 0
        %812 = vmatpush1.bf16.msra.mxu0 0
        %813 = vmatprep.subr.bf16.mxu0 0
        %814 = vmatpush1.bf16.msra.mxu0 0
        %815 = vmatprep.subr.bf16.mxu0 0
        %816 = vmatpush1.bf16.msra.mxu0 0
        %817 = vmatprep.subr.bf16.mxu0 0
        %818 = vmatpush1.bf16.msra.mxu0 0
        %819 = vmatprep.subr.bf16.mxu0 0
        %820 = vmatpush1.bf16.msra.mxu0 0
        %821 = vmatprep.subr.bf16.mxu0 0
        %822 = vmatpush1.bf16.msra.mxu0 0
        %823 = vmatprep.subr.bf16.mxu0 0
        %824 = vmatpush1.bf16.msra.mxu0 0
        %825 = vmatprep.subr.bf16.mxu0 0
        %826 = vmatpush1.bf16.msra.mxu0 0
        %827 = vmatprep.subr.bf16.mxu0 0
        %828 = vmatpush1.bf16.msra.mxu0 0
        %829 = vmatprep.subr.bf16.mxu0 0
        %830 = vmatpush1.bf16.msra.mxu0 0
        %831 = vmatprep.subr.bf16.mxu0 0
        %832 = vmatpush1.bf16.msra.mxu0 0
        %833 = vmatprep.mubr.bf16.mxu0 0
        %834 = vmatmul.mubr.bf16.gmra.mrb[0].mxu0 %v799
        %v835 = vpop.f32.mrb[0].mxu0
        %v836 = vadd.f32 0.0, %v835
        %v837 = vpop.f32.mrb[0].mxu0
        %v838 = vpop.f32.mrb[0].mxu0
        %v839 = vpop.f32.mrb[0].mxu0
        %840 = vdwg.mxu0
        %v841 = vsel %vm325, %v787, 0.0
        %v842 = vsel %vm325, %v836, 0.0
        %v843 = vadd.f32 %v841, %v842
        %v845 = vlaneseq
        %v846 = vshrl.u32 %v845, 7
        %v847 = vsub.s32 0, %v846
        %v848 = vrot.slane %v310, %v847
        %v850 = vadd.f32 %v843, %v848
        %851 = vst.msk [vmem:[%s277] sm:$0xff] %vm325, %v850
        %s852 = sand.u32 %s180, 1
        %s853 = scalar_lea.sflag [#allocation3], %s852
        %s854 = sand.u32 %s180, 1
        %s855 = smul.addr %s854, 8
        %s856 = scalar_lea.vmem [#allocation2], %s855
        // Predicated region
        $region45: #{tpu_custom_call.1} parent=43 // pred_check
          %p857 = pneg %p190
        $region46: #{tpu_custom_call.1} parent=43 // pred_check_branch
          %859 = sbr.rel (%p857) target = $region48
        $region47: #{tpu_custom_call.1} parent=43 // pred_region
          %s861 = ssub.s32 128, 128
          %862 = vsyncadd %s853, %s861
          %s863 = sadd.s32 %s25, %s24
          %s864 = smul.addr %s863, 128
          %s865 = scalar_lea.hbm %s6, %s864
          %s867 = sshll.u32 %s856, 4
          %s868 = int_to_ptr.vmem [resolvable:$true] %s867
          %870 = dma.vmem_to_hbm [thread:$0]  %s868, 128, %s865, %s853
        $region48: #{tpu_custom_call.1} parent=43 // pred_fallthru
          _
      $region44: #{tpu_custom_call.1} parent=5 // pred_fallthru
        _
      %p871 = scmp.le.s32.totalorder 2, %s15
      // Predicated region
      $region49: #{tpu_custom_call.1} parent=5 // pred_check
        %p872 = pneg %p871
      $region50: #{tpu_custom_call.1} parent=5 // pred_check_branch
        %874 = sbr.rel (%p872) target = $region52
      $region51: #{tpu_custom_call.1} parent=5 // pred_region
        %s875 = ssub.s32 %s15, 2
        // Predicated region
        $region53: #{tpu_custom_call.1} parent=51 // pred_check
          %p876 = pneg %p196
        $region54: #{tpu_custom_call.1} parent=51 // pred_check_branch
          %878 = sbr.rel (%p876) target = $region56
        $region55: #{tpu_custom_call.1} parent=51 // pred_region
          %s879 = sand.u32 %s181, 1
          %s880 = scalar_lea.sflag [#allocation3], %s879
          %s881 = sand.u32 %s181, 1
          %s882 = smul.addr %s881, 8
          %s883 = scalar_lea.vmem [#allocation2], %s882
          %884 = dma.done %s880, 128
        $region56: #{tpu_custom_call.1} parent=51 // pred_fallthru
          _
      $region52: #{tpu_custom_call.1} parent=5 // pred_fallthru
        _
    $region6: #{tpu_custom_call.1} parent=1 // loop_footer
      %s19 = sadd.s32 1, %s15
    $region7: #{tpu_custom_call.1} parent=1 // loop_footer_branch
      %14 = sbr.rel target = $region3
    $region8: #{tpu_custom_call.1} parent=1 // loop_exit
      _
    %885 = vsyncpa [#allocation3], 1
    %s886 = scalar_lea.sflag [#allocation3], 1
    %887 = vsyncpa %s886, 1

</llo_original>
